<compile_context>
chip_gen: v7x
topology: tpu7x:2x2x1
jax: 0.10.0
libtpu: 0.0.40
codegen_flags: <defaults>
</compile_context>

<pallas_src>
import jax
import jax.numpy as jnp
from jax.experimental import pallas as pl
from jax.experimental.pallas import tpu as pltpu

H1, H2 = 20, 10  # hidden widths fixed by the PyTorch module


def _round_up(n, m):
    return ((n + m - 1) // m) * m


def _make_kernel(in_size, out_size, offs):
    """Fused 3-layer MLP kernel on the transposed (lane-dense) problem.

    xt_ref: (in_size, Bt)   p_ref: packed params   ot_ref: (out_size, Bt)
    All parameter slices are static and start at 8-row-aligned offsets.
    """
    w1o, w2o, w3o, b1o, b2o, b3o = offs

    def kernel(xt_ref, p_ref, ot_ref):
        xt = xt_ref[...]                                      # (in, Bt)

        # Layer 1: (20, in) @ (in, Bt) + b1, ReLU
        w1 = p_ref[w1o:w1o + H1, 0:in_size]
        b1 = p_ref[b1o:b1o + H1, 0:1]
        a1 = jnp.maximum(
            jnp.dot(w1, xt, preferred_element_type=jnp.float32,
                    precision=jax.lax.Precision.HIGHEST) + b1, 0.0)

        # Layer 2: (10, 20) @ (20, Bt) + b2, ReLU
        w2 = p_ref[w2o:w2o + H2, 0:H1]
        b2 = p_ref[b2o:b2o + H2, 0:1]
        a2 = jnp.maximum(
            jnp.dot(w2, a1, preferred_element_type=jnp.float32,
                    precision=jax.lax.Precision.HIGHEST) + b2, 0.0)

        # Layer 3: (out, 10) @ (10, Bt) + b3
        w3 = p_ref[w3o:w3o + out_size, 0:H2]
        b3 = p_ref[b3o:b3o + out_size, 0:1]
        ot_ref[...] = (
            jnp.dot(w3, a2, preferred_element_type=jnp.float32,
                    precision=jax.lax.Precision.HIGHEST) + b3
        ).astype(ot_ref.dtype)

    return kernel


def pack_params(params, input_size, output_size):
    """Pack all six (W, b) tensors into ONE 2-D f32 buffer.  Call ONCE per
    parameter set (hoisted out of the per-call forward path).

    Weights are stored in their natural (fan_out, fan_in) orientation (the
    kernel computes W @ x.T); biases as (fan_out, 1) columns.  Every segment
    starts at an 8-row (sublane-tile) aligned offset.
    """
    w1o = 0
    w2o = _round_up(w1o + H1, 8)
    w3o = _round_up(w2o + H2, 8)
    b1o = _round_up(w3o + output_size, 8)
    b2o = _round_up(b1o + H1, 8)
    b3o = _round_up(b2o + H2, 8)
    rows = _round_up(b3o + output_size, 8)
    cols = max(input_size, H1, H2)

    p = jnp.zeros((rows, cols), jnp.float32)
    p = p.at[w1o:w1o + H1, 0:input_size].set(params["w1"])
    p = p.at[w2o:w2o + H2, 0:H1].set(params["w2"])
    p = p.at[w3o:w3o + output_size, 0:H2].set(params["w3"])
    p = p.at[b1o:b1o + H1, 0].set(params["b1"])
    p = p.at[b2o:b2o + H2, 0].set(params["b2"])
    p = p.at[b3o:b3o + output_size, 0].set(params["b3"])
    return p, (w1o, w2o, w3o, b1o, b2o, b3o)


def make_penguin_forward(input_size, output_size, offs, *, batch_tile=8192):
    """Build a jitted forward(x, packed) -> (B, output_size)."""
    assert batch_tile % 128 == 0, "batch_tile must be a multiple of 128 lanes"
    kernel = _make_kernel(input_size, output_size, offs)

    def forward(x, packed):
        B = x.shape[0]
        rows, cols = packed.shape
        # Lane-dense repack at the wrapper: batch goes to the lane (last) dim.
        xt = x.T                                              # (in_size, B)

        if B <= batch_tile:
            # Small/medium batch: gridless call, 2 operands, all resident in
            # VMEM, no grid-step / index_map overhead.
            ot = pl.pallas_call(
                kernel,
                out_shape=jax.ShapeDtypeStruct((output_size, B), jnp.float32),
                in_specs=[
                    pl.BlockSpec(memory_space=pltpu.MemorySpace.VMEM),
                    pl.BlockSpec(memory_space=pltpu.MemorySpace.VMEM),
                ],
                out_specs=pl.BlockSpec(memory_space=pltpu.MemorySpace.VMEM),
            )(xt, packed)
        else:
            # Large batch: tile the lane (batch) axis.  B > batch_tile implies
            # >= 2 grid steps, so the "parallel" axis shards across v7x's two
            # TensorCores.  The ragged last tile is handled by Pallas (OOB
            # reads are garbage, OOB writes dropped) -> no jnp.pad / out[:B].
            grid = pl.cdiv(B, batch_tile)
            ot = pl.pallas_call(
                kernel,
                out_shape=jax.ShapeDtypeStruct((output_size, B), jnp.float32),
                grid=(grid,),
                in_specs=[
                    pl.BlockSpec((input_size, batch_tile), lambda i: (0, i)),
                    pl.BlockSpec((rows, cols), lambda i: (0, 0)),  # resident
                ],
                out_specs=pl.BlockSpec((output_size, batch_tile),
                                       lambda i: (0, i)),
                compiler_params=pltpu.CompilerParams(
                    dimension_semantics=("parallel",)),
            )(xt, packed)

        return ot.T                                           # (B, output_size)

    return jax.jit(forward)


def init_params(key, input_size, output_size):
    """Deterministic synthetic init (PyTorch-style uniform(-1/sqrt(fan_in), +))."""
    ks = jax.random.split(key, 6)

    def linear(kw, kb, fan_in, fan_out):
        bound = 1.0 / jnp.sqrt(fan_in)
        w = jax.random.uniform(kw, (fan_out, fan_in), jnp.float32, -bound, bound)
        b = jax.random.uniform(kb, (fan_out,), jnp.float32, -bound, bound)
        return w, b

    w1, b1 = linear(ks[0], ks[1], input_size, H1)
    w2, b2 = linear(ks[2], ks[3], H1, H2)
    w3, b3 = linear(ks[4], ks[5], H2, output_size)
    return {"w1": w1, "b1": b1, "w2": w2, "b2": b2, "w3": w3, "b3": b3}


def reference_forward(x, params):
    """Pure-JAX reference matching nn.Sequential semantics exactly."""
    h = jnp.maximum(x @ params["w1"].T + params["b1"], 0.0)
    h = jnp.maximum(h @ params["w2"].T + params["b2"], 0.0)
    return h @ params["w3"].T + params["b3"]


if __name__ == "__main__":
    input_size, output_size = 4, 3  # penguin features -> species
    key = jax.random.PRNGKey(0)
    k_param, k_x1, k_x2 = jax.random.split(key, 3)

    params = init_params(k_param, input_size, output_size)

    # Pack parameters ONCE (hoisted out of the hot forward path).
    packed, offs = pack_params(params, input_size, output_size)
    packed = jax.block_until_ready(packed)

    # Small batch -> gridless fused kernel (the latency-critical path).
    fwd = make_penguin_forward(input_size, output_size, offs)
    x_small = jax.random.normal(k_x1, (8, input_size), jnp.float32)
    out_small = jax.block_until_ready(fwd(x_small, packed))
    ref_small = reference_forward(x_small, params)
    assert out_small.shape == (8, output_size)
    assert jnp.allclose(out_small, ref_small, atol=1e-4, rtol=1e-4), \
        "small-batch mismatch vs reference"

    # Larger batch with a small tile to exercise the lane-tiled path: resident
    # weights, "parallel" batch-lane grid axis, and a ragged last tile
    # (1000 = 3*256 + 232) with no wrapper-side pad/slice.
    fwd_tiled = make_penguin_forward(input_size, output_size, offs,
                                     batch_tile=256)
    x_big = jax.random.normal(k_x2, (1000, input_size), jnp.float32)
    out_big = jax.block_until_ready(fwd_tiled(x_big, packed))
    ref_big = reference_forward(x_big, params)
    assert out_big.shape == (1000, output_size)
    assert jnp.allclose(out_big, ref_big, atol=1e-4, rtol=1e-4), \
        "tiled-batch mismatch vs reference"

    print("KERNEL_OK")
</pallas_src>

<mosaic_0001>
module attributes {stable_mosaic.version = 11 : i64} {
  func.func @kernel(%arg0: memref<4x8xf32, #tpu.memory_space<vmem>>, %arg1: memref<96x20xf32, #tpu.memory_space<vmem>>, %arg2: memref<3x8xf32, #tpu.memory_space<vmem>>) attributes {dimension_semantics = [], scalar_prefetch = 0 : i64, scratch_operands = 0 : i64, tpu.core_type = #tpu.core_type<tc>} {
    %c0 = arith.constant 0 : index
    %c0_0 = arith.constant 0 : index
    %0 = vector.load %arg0[%c0, %c0_0] : memref<4x8xf32, #tpu.memory_space<vmem>>, vector<4x8xf32>
    %c0_1 = arith.constant 0 : index
    %c0_2 = arith.constant 0 : index
    %1 = vector.load %arg1[%c0_1, %c0_2] : memref<96x20xf32, #tpu.memory_space<vmem>>, vector<20x4xf32>
    %c48 = arith.constant 48 : index
    %c0_3 = arith.constant 0 : index
    %2 = vector.load %arg1[%c48, %c0_3] : memref<96x20xf32, #tpu.memory_space<vmem>>, vector<20x1xf32>
    %cst = arith.constant dense<0.000000e+00> : vector<20x8xf32>
    %3 = tpu.matmul %1, %0, %cst {dimension_numbers = #tpu.dot_dimension_numbers<[1], [0], [0], [1], [0, 0, 1, 1], [], []>, precision = #tpu.contract_precision<fp32>} : vector<20x4xf32>, vector<4x8xf32>, vector<20x8xf32> -> vector<20x8xf32>
    %4 = vector.broadcast %2 : vector<20x1xf32> to vector<20x8xf32>
    %5 = arith.addf %3, %4 : vector<20x8xf32>
    %cst_4 = arith.constant 0.000000e+00 : f32
    %6 = vector.broadcast %cst_4 : f32 to vector<20x8xf32>
    %7 = arith.maximumf %5, %6 : vector<20x8xf32>
    %c24 = arith.constant 24 : index
    %c0_5 = arith.constant 0 : index
    %8 = vector.load %arg1[%c24, %c0_5] : memref<96x20xf32, #tpu.memory_space<vmem>>, vector<10x20xf32>
    %c72 = arith.constant 72 : index
    %c0_6 = arith.constant 0 : index
    %9 = vector.load %arg1[%c72, %c0_6] : memref<96x20xf32, #tpu.memory_space<vmem>>, vector<10x1xf32>
    %cst_7 = arith.constant dense<0.000000e+00> : vector<10x8xf32>
    %10 = tpu.matmul %8, %7, %cst_7 {dimension_numbers = #tpu.dot_dimension_numbers<[1], [0], [0], [1], [0, 0, 1, 1], [], []>, precision = #tpu.contract_precision<fp32>} : vector<10x20xf32>, vector<20x8xf32>, vector<10x8xf32> -> vector<10x8xf32>
    %11 = vector.broadcast %9 : vector<10x1xf32> to vector<10x8xf32>
    %12 = arith.addf %10, %11 : vector<10x8xf32>
    %cst_8 = arith.constant 0.000000e+00 : f32
    %13 = vector.broadcast %cst_8 : f32 to vector<10x8xf32>
    %14 = arith.maximumf %12, %13 : vector<10x8xf32>
    %c40 = arith.constant 40 : index
    %c0_9 = arith.constant 0 : index
    %15 = vector.load %arg1[%c40, %c0_9] : memref<96x20xf32, #tpu.memory_space<vmem>>, vector<3x10xf32>
    %c88 = arith.constant 88 : index
    %c0_10 = arith.constant 0 : index
    %16 = vector.load %arg1[%c88, %c0_10] : memref<96x20xf32, #tpu.memory_space<vmem>>, vector<3x1xf32>
    %cst_11 = arith.constant dense<0.000000e+00> : vector<3x8xf32>
    %17 = tpu.matmul %15, %14, %cst_11 {dimension_numbers = #tpu.dot_dimension_numbers<[1], [0], [0], [1], [0, 0, 1, 1], [], []>, precision = #tpu.contract_precision<fp32>} : vector<3x10xf32>, vector<10x8xf32>, vector<3x8xf32> -> vector<3x8xf32>
    %18 = vector.broadcast %16 : vector<3x1xf32> to vector<3x8xf32>
    %19 = arith.addf %17, %18 : vector<3x8xf32>
    %c0_12 = arith.constant 0 : index
    %c0_13 = arith.constant 0 : index
    %20 = vector.load %arg2[%c0_12, %c0_13] : memref<3x8xf32, #tpu.memory_space<vmem>>, vector<3x8xf32>
    tpu.vector_store %arg2[%c0_12, %c0_13], %19 {strides = array<i32>} : memref<3x8xf32, #tpu.memory_space<vmem>>, vector<3x8xf32>,
    return
  }
}

</mosaic_0001>

<llo_original>
// kernel: forward.1
$region0: #{forward.1}
  #allocation0 [shape = 'u32[]', space=smem, size = 0x4, offset = 0x4, fixed_abs, tag = 'smem constant byte address 0x4 - core index']
  #allocation1 [shape = 'u32[144,128]{1,0:T(1,128)}', space=vmem, size = 0x12000, scoped, tag = 'internal scratch']
  %s0 = inlined_call_operand.vmem [shape: f32[4,8], index: 0, kind: input, shape index: {}]
  %s1 = inlined_call_operand.vmem [shape: f32[96,20], index: 1, kind: input, shape index: {}]
  %s2 = inlined_call_operand.hbm [shape: f32[3,8], index: 2, kind: output, shape index: {}]
  %s3 = sld [smem:[#allocation0]]
  $region18: #{forward.1} parent=0
    _
  %s5 = ssub.s32 1, %s3
  %s6 = scalar_select 0, %s5, %s3
  $region1: #{forward.1} parent=0
    #allocation2 [shape = 'u8[2048]{0}', space=vmem, size = 0x800, scoped, tag = 'output window, operand 0, single buffered']
    #allocation3 [shape = 's32[1]{0}', space=sflag, size = 0x4, scoped, tag = 'scoped memory for forward.1']
    %7 = vsyncpa [#allocation3], 0
    // Predicated region
    $region2: #{forward.1} parent=1 // pred_check
      _
    $region3: #{forward.1} parent=1 // pred_check_branch
      %9 = sbr.rel (0) target = $region5
    $region4: #{forward.1} parent=1 // pred_region
      _
    $region5: #{forward.1} parent=1 // pred_fallthru
      _
    // Predicated region
    $region6: #{forward.1} parent=1 // pred_check
      _
    $region7: #{forward.1} parent=1 // pred_check_branch
      %11 = sbr.rel (0) target = $region9
    $region8: #{forward.1} parent=1 // pred_region
      _
    $region9: #{forward.1} parent=1 // pred_fallthru
      _
    %v12 = vld [vmem:[%s0] sm:$0xf]
    %v13 = vld [vmem:[%s1] sm:$0xff]
    %v14 = vld [vmem:[%s1 + $0x8] sm:$0xff]
    %v15 = vld [vmem:[%s1 + $0x10] sm:$0xf]
    %v16 = vld [vmem:[%s1 + $0x30] sm:$0xff]
    %v17 = vld [vmem:[%s1 + $0x38] sm:$0xff]
    %v18 = vld [vmem:[%s1 + $0x40] sm:$0xf]
    %20 = vset.pattern.permute.xlu0 0
    %21 = vperm.xlu0 %20, %v16
    %v22 = vpop.permute.xlu0 %21
    %25 = vset.pattern.permute.xlu0 0
    %26 = vperm.xlu0 %25, %v17
    %v27 = vpop.permute.xlu0 %26
    %30 = vset.pattern.permute.xlu0 0
    %31 = vperm.xlu0 %30, %v18
    %v32 = vpop.permute.xlu0 %31
    %vm34 = vcmask 31744
    %v36 = vsel %vm34, %v13, 0
    %v39 = vsel %vm34, %v14, 0
    %v42 = vsel %vm34, %v15, 0
    %vm44 = vcmask 1043456
    %v46 = vsel %vm44, %v12, 0
    %48 = vmatprep.subr.mxu0 0.0
    %v49 = vand.u32 %v46, 4294901760
    %50 = vmatpush1.msra.mxu0 %v49
    %51 = vmatprep.subr.mxu0 0.0
    %52 = vmatpush1.msra.mxu0 0.0
    %53 = vmatprep.subr.mxu0 0.0
    %54 = vmatpush1.msra.mxu0 0.0
    %55 = vmatprep.subr.mxu0 0.0
    %56 = vmatpush1.msra.mxu0 0.0
    %57 = vmatprep.subr.mxu0 0.0
    %58 = vmatpush1.msra.mxu0 0.0
    %59 = vmatprep.subr.mxu0 0.0
    %60 = vmatpush1.msra.mxu0 0.0
    %61 = vmatprep.subr.mxu0 0.0
    %62 = vmatpush1.msra.mxu0 0.0
    %63 = vmatprep.subr.mxu0 0.0
    %64 = vmatpush1.msra.mxu0 0.0
    %65 = vmatprep.subr.mxu0 0.0
    %66 = vmatpush1.msra.mxu0 0.0
    %67 = vmatprep.subr.mxu0 0.0
    %68 = vmatpush1.msra.mxu0 0.0
    %69 = vmatprep.subr.mxu0 0.0
    %70 = vmatpush1.msra.mxu0 0.0
    %71 = vmatprep.subr.mxu0 0.0
    %72 = vmatpush1.msra.mxu0 0.0
    %73 = vmatprep.subr.mxu0 0.0
    %74 = vmatpush1.msra.mxu0 0.0
    %75 = vmatprep.subr.mxu0 0.0
    %76 = vmatpush1.msra.mxu0 0.0
    %77 = vmatprep.subr.mxu0 0.0
    %78 = vmatpush1.msra.mxu0 0.0
    %79 = vmatprep.subr.mxu0 0.0
    %80 = vmatpush1.msra.mxu0 0.0
    %81 = vmatprep.subr.mxu0 0.0
    %82 = vmatpush1.msra.mxu0 0.0
    %83 = vmatprep.subr.mxu0 0.0
    %84 = vmatpush1.msra.mxu0 0.0
    %85 = vmatprep.subr.mxu0 0.0
    %86 = vmatpush1.msra.mxu0 0.0
    %87 = vmatprep.subr.mxu0 0.0
    %88 = vmatpush1.msra.mxu0 0.0
    %89 = vmatprep.subr.mxu0 0.0
    %90 = vmatpush1.msra.mxu0 0.0
    %91 = vmatprep.subr.mxu0 0.0
    %92 = vmatpush1.msra.mxu0 0.0
    %93 = vmatprep.subr.mxu0 0.0
    %94 = vmatpush1.msra.mxu0 0.0
    %95 = vmatprep.subr.mxu0 0.0
    %96 = vmatpush1.msra.mxu0 0.0
    %97 = vmatprep.subr.mxu0 0.0
    %98 = vmatpush1.msra.mxu0 0.0
    %99 = vmatprep.subr.mxu0 0.0
    %100 = vmatpush1.msra.mxu0 0.0
    %101 = vmatprep.subr.mxu0 0.0
    %102 = vmatpush1.msra.mxu0 0.0
    %103 = vmatprep.subr.mxu0 0.0
    %104 = vmatpush1.msra.mxu0 0.0
    %105 = vmatprep.subr.mxu0 0.0
    %106 = vmatpush1.msra.mxu0 0.0
    %107 = vmatprep.subr.mxu0 0.0
    %108 = vmatpush1.msra.mxu0 0.0
    %109 = vmatprep.subr.mxu0 0.0
    %110 = vmatpush1.msra.mxu0 0.0
    %111 = vmatprep.subr.mxu0 0.0
    %112 = vmatpush1.msra.mxu0 0.0
    %113 = vmatprep.mubr.f32.mxu0 0.0
    %v114 = vand.u32 %v36, 4294901760
    %v115 = vsub.f32 %v36, %v114
    %v116 = vand.u32 %v115, 4294901760
    %v117 = vsub.f32 %v115, %v116
    %v118 = vand.u32 %v117, 4294901760
    %119 = vmatmul.mubr.f32.gmra.mrb[0].mxu0 %v118
    %v120 = vpop.f32.mrb[0].mxu0
    %v121 = vadd.f32 %v22, %v120
    %v122 = vpop.f32.mrb[0].mxu0
    %123 = vmatprep.mubr.f32.mxu0 0.0
    %v124 = vand.u32 %v39, 4294901760
    %v125 = vsub.f32 %v39, %v124
    %v126 = vand.u32 %v125, 4294901760
    %v127 = vsub.f32 %v125, %v126
    %v128 = vand.u32 %v127, 4294901760
    %129 = vmatmul.mubr.f32.gmra.mrb[0].mxu0 %v128
    %v130 = vpop.f32.mrb[0].mxu0
    %v131 = vadd.f32 %v27, %v130
    %v132 = vpop.f32.mrb[0].mxu0
    %133 = vmatprep.mubr.f32.mxu0 0.0
    %v134 = vand.u32 %v42, 4294901760
    %v135 = vsub.f32 %v42, %v134
    %v136 = vand.u32 %v135, 4294901760
    %v137 = vsub.f32 %v135, %v136
    %v138 = vand.u32 %v137, 4294901760
    %139 = vmatmul.mubr.f32.gmra.mrb[0].mxu0 %v138
    %v140 = vpop.f32.mrb[0].mxu0
    %v141 = vadd.f32 %v32, %v140
    %v142 = vpop.f32.mrb[0].mxu0
    %143 = vdwg.mxu0
    %144 = vmatprep.subr.mxu0 0.0
    %v145 = vand.u32 %v46, 4294901760
    %v146 = vsub.f32 %v46, %v145
    %v147 = vand.u32 %v146, 4294901760
    %v148 = vsub.f32 %v146, %v147
    %v149 = vand.u32 %v148, 4294901760
    %150 = vmatpush1.msra.mxu0 %v149
    %151 = vmatprep.subr.mxu0 0.0
    %152 = vmatpush1.msra.mxu0 0.0
    %153 = vmatprep.subr.mxu0 0.0
    %154 = vmatpush1.msra.mxu0 0.0
    %155 = vmatprep.subr.mxu0 0.0
    %156 = vmatpush1.msra.mxu0 0.0
    %157 = vmatprep.subr.mxu0 0.0
    %158 = vmatpush1.msra.mxu0 0.0
    %159 = vmatprep.subr.mxu0 0.0
    %160 = vmatpush1.msra.mxu0 0.0
    %161 = vmatprep.subr.mxu0 0.0
    %162 = vmatpush1.msra.mxu0 0.0
    %163 = vmatprep.subr.mxu0 0.0
    %164 = vmatpush1.msra.mxu0 0.0
    %165 = vmatprep.subr.mxu0 0.0
    %166 = vmatpush1.msra.mxu0 0.0
    %167 = vmatprep.subr.mxu0 0.0
    %168 = vmatpush1.msra.mxu0 0.0
    %169 = vmatprep.subr.mxu0 0.0
    %170 = vmatpush1.msra.mxu0 0.0
    %171 = vmatprep.subr.mxu0 0.0
    %172 = vmatpush1.msra.mxu0 0.0
    %173 = vmatprep.subr.mxu0 0.0
    %174 = vmatpush1.msra.mxu0 0.0
    %175 = vmatprep.subr.mxu0 0.0
    %176 = vmatpush1.msra.mxu0 0.0
    %177 = vmatprep.subr.mxu0 0.0
    %178 = vmatpush1.msra.mxu0 0.0
    %179 = vmatprep.subr.mxu0 0.0
    %180 = vmatpush1.msra.mxu0 0.0
    %181 = vmatprep.subr.mxu0 0.0
    %182 = vmatpush1.msra.mxu0 0.0
    %183 = vmatprep.subr.mxu0 0.0
    %184 = vmatpush1.msra.mxu0 0.0
    %185 = vmatprep.subr.mxu0 0.0
    %186 = vmatpush1.msra.mxu0 0.0
    %187 = vmatprep.subr.mxu0 0.0
    %188 = vmatpush1.msra.mxu0 0.0
    %189 = vmatprep.subr.mxu0 0.0
    %190 = vmatpush1.msra.mxu0 0.0
    %191 = vmatprep.subr.mxu0 0.0
    %192 = vmatpush1.msra.mxu0 0.0
    %193 = vmatprep.subr.mxu0 0.0
    %194 = vmatpush1.msra.mxu0 0.0
    %195 = vmatprep.subr.mxu0 0.0
    %196 = vmatpush1.msra.mxu0 0.0
    %197 = vmatprep.subr.mxu0 0.0
    %198 = vmatpush1.msra.mxu0 0.0
    %199 = vmatprep.subr.mxu0 0.0
    %200 = vmatpush1.msra.mxu0 0.0
    %201 = vmatprep.subr.mxu0 0.0
    %202 = vmatpush1.msra.mxu0 0.0
    %203 = vmatprep.subr.mxu0 0.0
    %204 = vmatpush1.msra.mxu0 0.0
    %205 = vmatprep.subr.mxu0 0.0
    %206 = vmatpush1.msra.mxu0 0.0
    %207 = vmatprep.subr.mxu0 0.0
    %208 = vmatpush1.msra.mxu0 0.0
    %209 = vmatprep.subr.mxu0 0.0
    %210 = vmatpush1.msra.mxu0 0.0
    %211 = vmatprep.subr.mxu0 0.0
    %212 = vmatpush1.msra.mxu0 0.0
    %213 = vmatprep.mubr.f32.mxu0 0.0
    %v214 = vand.u32 %v36, 4294901760
    %215 = vmatmul.mubr.f32.gmra.mrb[0].mxu0 %v214
    %v216 = vpop.f32.mrb[0].mxu0
    %v217 = vadd.f32 %v121, %v216
    %v218 = vpop.f32.mrb[0].mxu0
    %219 = vmatprep.mubr.f32.mxu0 0.0
    %v220 = vand.u32 %v39, 4294901760
    %221 = vmatmul.mubr.f32.gmra.mrb[0].mxu0 %v220
    %v222 = vpop.f32.mrb[0].mxu0
    %v223 = vadd.f32 %v131, %v222
    %v224 = vpop.f32.mrb[0].mxu0
    %225 = vmatprep.mubr.f32.mxu0 0.0
    %v226 = vand.u32 %v42, 4294901760
    %227 = vmatmul.mubr.f32.gmra.mrb[0].mxu0 %v226
    %v228 = vpop.f32.mrb[0].mxu0
    %v229 = vadd.f32 %v141, %v228
    %v230 = vpop.f32.mrb[0].mxu0
    %231 = vdwg.mxu0
    %232 = vmatprep.subr.mxu0 0.0
    %v233 = vand.u32 %v46, 4294901760
    %v234 = vsub.f32 %v46, %v233
    %235 = vmatpush1.msra.mxu0 %v234
    %236 = vmatprep.subr.mxu0 0.0
    %237 = vmatpush1.msra.mxu0 0.0
    %238 = vmatprep.subr.mxu0 0.0
    %239 = vmatpush1.msra.mxu0 0.0
    %240 = vmatprep.subr.mxu0 0.0
    %241 = vmatpush1.msra.mxu0 0.0
    %242 = vmatprep.subr.mxu0 0.0
    %243 = vmatpush1.msra.mxu0 0.0
    %244 = vmatprep.subr.mxu0 0.0
    %245 = vmatpush1.msra.mxu0 0.0
    %246 = vmatprep.subr.mxu0 0.0
    %247 = vmatpush1.msra.mxu0 0.0
    %248 = vmatprep.subr.mxu0 0.0
    %249 = vmatpush1.msra.mxu0 0.0
    %250 = vmatprep.subr.mxu0 0.0
    %251 = vmatpush1.msra.mxu0 0.0
    %252 = vmatprep.subr.mxu0 0.0
    %253 = vmatpush1.msra.mxu0 0.0
    %254 = vmatprep.subr.mxu0 0.0
    %255 = vmatpush1.msra.mxu0 0.0
    %256 = vmatprep.subr.mxu0 0.0
    %257 = vmatpush1.msra.mxu0 0.0
    %258 = vmatprep.subr.mxu0 0.0
    %259 = vmatpush1.msra.mxu0 0.0
    %260 = vmatprep.subr.mxu0 0.0
    %261 = vmatpush1.msra.mxu0 0.0
    %262 = vmatprep.subr.mxu0 0.0
    %263 = vmatpush1.msra.mxu0 0.0
    %264 = vmatprep.subr.mxu0 0.0
    %265 = vmatpush1.msra.mxu0 0.0
    %266 = vmatprep.subr.mxu0 0.0
    %267 = vmatpush1.msra.mxu0 0.0
    %268 = vmatprep.subr.mxu0 0.0
    %269 = vmatpush1.msra.mxu0 0.0
    %270 = vmatprep.subr.mxu0 0.0
    %271 = vmatpush1.msra.mxu0 0.0
    %272 = vmatprep.subr.mxu0 0.0
    %273 = vmatpush1.msra.mxu0 0.0
    %274 = vmatprep.subr.mxu0 0.0
    %275 = vmatpush1.msra.mxu0 0.0
    %276 = vmatprep.subr.mxu0 0.0
    %277 = vmatpush1.msra.mxu0 0.0
    %278 = vmatprep.subr.mxu0 0.0
    %279 = vmatpush1.msra.mxu0 0.0
    %280 = vmatprep.subr.mxu0 0.0
    %281 = vmatpush1.msra.mxu0 0.0
    %282 = vmatprep.subr.mxu0 0.0
    %283 = vmatpush1.msra.mxu0 0.0
    %284 = vmatprep.subr.mxu0 0.0
    %285 = vmatpush1.msra.mxu0 0.0
    %286 = vmatprep.subr.mxu0 0.0
    %287 = vmatpush1.msra.mxu0 0.0
    %288 = vmatprep.subr.mxu0 0.0
    %289 = vmatpush1.msra.mxu0 0.0
    %290 = vmatprep.subr.mxu0 0.0
    %291 = vmatpush1.msra.mxu0 0.0
    %292 = vmatprep.subr.mxu0 0.0
    %293 = vmatpush1.msra.mxu0 0.0
    %294 = vmatprep.subr.mxu0 0.0
    %295 = vmatpush1.msra.mxu0 0.0
    %296 = vmatprep.subr.mxu0 0.0
    %297 = vmatpush1.msra.mxu0 0.0
    %298 = vmatprep.mubr.f32.mxu0 0.0
    %v299 = vand.u32 %v36, 4294901760
    %v300 = vsub.f32 %v36, %v299
    %301 = vmatmul.mubr.f32.gmra.mrb[0].mxu0 %v300
    %v302 = vpop.f32.mrb[0].mxu0
    %v303 = vadd.f32 %v217, %v302
    %v304 = vpop.f32.mrb[0].mxu0
    %305 = vmatprep.mubr.f32.mxu0 0.0
    %v306 = vand.u32 %v39, 4294901760
    %v307 = vsub.f32 %v39, %v306
    %308 = vmatmul.mubr.f32.gmra.mrb[0].mxu0 %v307
    %v309 = vpop.f32.mrb[0].mxu0
    %v310 = vadd.f32 %v223, %v309
    %v311 = vpop.f32.mrb[0].mxu0
    %312 = vmatprep.mubr.f32.mxu0 0.0
    %v313 = vand.u32 %v42, 4294901760
    %v314 = vsub.f32 %v42, %v313
    %315 = vmatmul.mubr.f32.gmra.mrb[0].mxu0 %v314
    %v316 = vpop.f32.mrb[0].mxu0
    %v317 = vadd.f32 %v229, %v316
    %v318 = vpop.f32.mrb[0].mxu0
    %319 = vdwg.mxu0
    %320 = vmatprep.subr.mxu0 0.0
    %v321 = vand.u32 %v46, 4294901760
    %322 = vmatpush1.msra.mxu0 %v321
    %323 = vmatprep.subr.mxu0 0.0
    %324 = vmatpush1.msra.mxu0 0.0
    %325 = vmatprep.subr.mxu0 0.0
    %326 = vmatpush1.msra.mxu0 0.0
    %327 = vmatprep.subr.mxu0 0.0
    %328 = vmatpush1.msra.mxu0 0.0
    %329 = vmatprep.subr.mxu0 0.0
    %330 = vmatpush1.msra.mxu0 0.0
    %331 = vmatprep.subr.mxu0 0.0
    %332 = vmatpush1.msra.mxu0 0.0
    %333 = vmatprep.subr.mxu0 0.0
    %334 = vmatpush1.msra.mxu0 0.0
    %335 = vmatprep.subr.mxu0 0.0
    %336 = vmatpush1.msra.mxu0 0.0
    %337 = vmatprep.subr.mxu0 0.0
    %338 = vmatpush1.msra.mxu0 0.0
    %339 = vmatprep.subr.mxu0 0.0
    %340 = vmatpush1.msra.mxu0 0.0
    %341 = vmatprep.subr.mxu0 0.0
    %342 = vmatpush1.msra.mxu0 0.0
    %343 = vmatprep.subr.mxu0 0.0
    %344 = vmatpush1.msra.mxu0 0.0
    %345 = vmatprep.subr.mxu0 0.0
    %346 = vmatpush1.msra.mxu0 0.0
    %347 = vmatprep.subr.mxu0 0.0
    %348 = vmatpush1.msra.mxu0 0.0
    %349 = vmatprep.subr.mxu0 0.0
    %350 = vmatpush1.msra.mxu0 0.0
    %351 = vmatprep.subr.mxu0 0.0
    %352 = vmatpush1.msra.mxu0 0.0
    %353 = vmatprep.subr.mxu0 0.0
    %354 = vmatpush1.msra.mxu0 0.0
    %355 = vmatprep.subr.mxu0 0.0
    %356 = vmatpush1.msra.mxu0 0.0
    %357 = vmatprep.subr.mxu0 0.0
    %358 = vmatpush1.msra.mxu0 0.0
    %359 = vmatprep.subr.mxu0 0.0
    %360 = vmatpush1.msra.mxu0 0.0
    %361 = vmatprep.subr.mxu0 0.0
    %362 = vmatpush1.msra.mxu0 0.0
    %363 = vmatprep.subr.mxu0 0.0
    %364 = vmatpush1.msra.mxu0 0.0
    %365 = vmatprep.subr.mxu0 0.0
    %366 = vmatpush1.msra.mxu0 0.0
    %367 = vmatprep.subr.mxu0 0.0
    %368 = vmatpush1.msra.mxu0 0.0
    %369 = vmatprep.subr.mxu0 0.0
    %370 = vmatpush1.msra.mxu0 0.0
    %371 = vmatprep.subr.mxu0 0.0
    %372 = vmatpush1.msra.mxu0 0.0
    %373 = vmatprep.subr.mxu0 0.0
    %374 = vmatpush1.msra.mxu0 0.0
    %375 = vmatprep.subr.mxu0 0.0
    %376 = vmatpush1.msra.mxu0 0.0
    %377 = vmatprep.subr.mxu0 0.0
    %378 = vmatpush1.msra.mxu0 0.0
    %379 = vmatprep.subr.mxu0 0.0
    %380 = vmatpush1.msra.mxu0 0.0
    %381 = vmatprep.subr.mxu0 0.0
    %382 = vmatpush1.msra.mxu0 0.0
    %383 = vmatprep.subr.mxu0 0.0
    %384 = vmatpush1.msra.mxu0 0.0
    %385 = vmatprep.mubr.f32.mxu0 0.0
    %v386 = vand.u32 %v36, 4294901760
    %v387 = vsub.f32 %v36, %v386
    %v388 = vand.u32 %v387, 4294901760
    %389 = vmatmul.mubr.f32.gmra.mrb[0].mxu0 %v388
    %v390 = vpop.f32.mrb[0].mxu0
    %v391 = vadd.f32 %v303, %v390
    %v392 = vpop.f32.mrb[0].mxu0
    %393 = vmatprep.mubr.f32.mxu0 0.0
    %v394 = vand.u32 %v39, 4294901760
    %v395 = vsub.f32 %v39, %v394
    %v396 = vand.u32 %v395, 4294901760
    %397 = vmatmul.mubr.f32.gmra.mrb[0].mxu0 %v396
    %v398 = vpop.f32.mrb[0].mxu0
    %v399 = vadd.f32 %v310, %v398
    %v400 = vpop.f32.mrb[0].mxu0
    %401 = vmatprep.mubr.f32.mxu0 0.0
    %v402 = vand.u32 %v42, 4294901760
    %v403 = vsub.f32 %v42, %v402
    %v404 = vand.u32 %v403, 4294901760
    %405 = vmatmul.mubr.f32.gmra.mrb[0].mxu0 %v404
    %v406 = vpop.f32.mrb[0].mxu0
    %v407 = vadd.f32 %v317, %v406
    %v408 = vpop.f32.mrb[0].mxu0
    %409 = vdwg.mxu0
    %410 = vmatprep.subr.mxu0 0.0
    %v411 = vand.u32 %v46, 4294901760
    %v412 = vsub.f32 %v46, %v411
    %v413 = vand.u32 %v412, 4294901760
    %414 = vmatpush1.msra.mxu0 %v413
    %415 = vmatprep.subr.mxu0 0.0
    %416 = vmatpush1.msra.mxu0 0.0
    %417 = vmatprep.subr.mxu0 0.0
    %418 = vmatpush1.msra.mxu0 0.0
    %419 = vmatprep.subr.mxu0 0.0
    %420 = vmatpush1.msra.mxu0 0.0
    %421 = vmatprep.subr.mxu0 0.0
    %422 = vmatpush1.msra.mxu0 0.0
    %423 = vmatprep.subr.mxu0 0.0
    %424 = vmatpush1.msra.mxu0 0.0
    %425 = vmatprep.subr.mxu0 0.0
    %426 = vmatpush1.msra.mxu0 0.0
    %427 = vmatprep.subr.mxu0 0.0
    %428 = vmatpush1.msra.mxu0 0.0
    %429 = vmatprep.subr.mxu0 0.0
    %430 = vmatpush1.msra.mxu0 0.0
    %431 = vmatprep.subr.mxu0 0.0
    %432 = vmatpush1.msra.mxu0 0.0
    %433 = vmatprep.subr.mxu0 0.0
    %434 = vmatpush1.msra.mxu0 0.0
    %435 = vmatprep.subr.mxu0 0.0
    %436 = vmatpush1.msra.mxu0 0.0
    %437 = vmatprep.subr.mxu0 0.0
    %438 = vmatpush1.msra.mxu0 0.0
    %439 = vmatprep.subr.mxu0 0.0
    %440 = vmatpush1.msra.mxu0 0.0
    %441 = vmatprep.subr.mxu0 0.0
    %442 = vmatpush1.msra.mxu0 0.0
    %443 = vmatprep.subr.mxu0 0.0
    %444 = vmatpush1.msra.mxu0 0.0
    %445 = vmatprep.subr.mxu0 0.0
    %446 = vmatpush1.msra.mxu0 0.0
    %447 = vmatprep.subr.mxu0 0.0
    %448 = vmatpush1.msra.mxu0 0.0
    %449 = vmatprep.subr.mxu0 0.0
    %450 = vmatpush1.msra.mxu0 0.0
    %451 = vmatprep.subr.mxu0 0.0
    %452 = vmatpush1.msra.mxu0 0.0
    %453 = vmatprep.subr.mxu0 0.0
    %454 = vmatpush1.msra.mxu0 0.0
    %455 = vmatprep.subr.mxu0 0.0
    %456 = vmatpush1.msra.mxu0 0.0
    %457 = vmatprep.subr.mxu0 0.0
    %458 = vmatpush1.msra.mxu0 0.0
    %459 = vmatprep.subr.mxu0 0.0
    %460 = vmatpush1.msra.mxu0 0.0
    %461 = vmatprep.subr.mxu0 0.0
    %462 = vmatpush1.msra.mxu0 0.0
    %463 = vmatprep.subr.mxu0 0.0
    %464 = vmatpush1.msra.mxu0 0.0
    %465 = vmatprep.subr.mxu0 0.0
    %466 = vmatpush1.msra.mxu0 0.0
    %467 = vmatprep.subr.mxu0 0.0
    %468 = vmatpush1.msra.mxu0 0.0
    %469 = vmatprep.subr.mxu0 0.0
    %470 = vmatpush1.msra.mxu0 0.0
    %471 = vmatprep.subr.mxu0 0.0
    %472 = vmatpush1.msra.mxu0 0.0
    %473 = vmatprep.subr.mxu0 0.0
    %474 = vmatpush1.msra.mxu0 0.0
    %475 = vmatprep.subr.mxu0 0.0
    %476 = vmatpush1.msra.mxu0 0.0
    %477 = vmatprep.mubr.f32.mxu0 0.0
    %v478 = vand.u32 %v36, 4294901760
    %479 = vmatmul.mubr.f32.gmra.mrb[0].mxu0 %v478
    %v480 = vpop.f32.mrb[0].mxu0
    %v481 = vadd.f32 %v391, %v480
    %v482 = vpop.f32.mrb[0].mxu0
    %483 = vmatprep.mubr.f32.mxu0 0.0
    %v484 = vand.u32 %v39, 4294901760
    %485 = vmatmul.mubr.f32.gmra.mrb[0].mxu0 %v484
    %v486 = vpop.f32.mrb[0].mxu0
    %v487 = vadd.f32 %v399, %v486
    %v488 = vpop.f32.mrb[0].mxu0
    %489 = vmatprep.mubr.f32.mxu0 0.0
    %v490 = vand.u32 %v42, 4294901760
    %491 = vmatmul.mubr.f32.gmra.mrb[0].mxu0 %v490
    %v492 = vpop.f32.mrb[0].mxu0
    %v493 = vadd.f32 %v407, %v492
    %v494 = vpop.f32.mrb[0].mxu0
    %495 = vdwg.mxu0
    %496 = vmatprep.subr.mxu0 0.0
    %v497 = vand.u32 %v46, 4294901760
    %498 = vmatpush1.msra.mxu0 %v497
    %499 = vmatprep.subr.mxu0 0.0
    %500 = vmatpush1.msra.mxu0 0.0
    %501 = vmatprep.subr.mxu0 0.0
    %502 = vmatpush1.msra.mxu0 0.0
    %503 = vmatprep.subr.mxu0 0.0
    %504 = vmatpush1.msra.mxu0 0.0
    %505 = vmatprep.subr.mxu0 0.0
    %506 = vmatpush1.msra.mxu0 0.0
    %507 = vmatprep.subr.mxu0 0.0
    %508 = vmatpush1.msra.mxu0 0.0
    %509 = vmatprep.subr.mxu0 0.0
    %510 = vmatpush1.msra.mxu0 0.0
    %511 = vmatprep.subr.mxu0 0.0
    %512 = vmatpush1.msra.mxu0 0.0
    %513 = vmatprep.subr.mxu0 0.0
    %514 = vmatpush1.msra.mxu0 0.0
    %515 = vmatprep.subr.mxu0 0.0
    %516 = vmatpush1.msra.mxu0 0.0
    %517 = vmatprep.subr.mxu0 0.0
    %518 = vmatpush1.msra.mxu0 0.0
    %519 = vmatprep.subr.mxu0 0.0
    %520 = vmatpush1.msra.mxu0 0.0
    %521 = vmatprep.subr.mxu0 0.0
    %522 = vmatpush1.msra.mxu0 0.0
    %523 = vmatprep.subr.mxu0 0.0
    %524 = vmatpush1.msra.mxu0 0.0
    %525 = vmatprep.subr.mxu0 0.0
    %526 = vmatpush1.msra.mxu0 0.0
    %527 = vmatprep.subr.mxu0 0.0
    %528 = vmatpush1.msra.mxu0 0.0
    %529 = vmatprep.subr.mxu0 0.0
    %530 = vmatpush1.msra.mxu0 0.0
    %531 = vmatprep.subr.mxu0 0.0
    %532 = vmatpush1.msra.mxu0 0.0
    %533 = vmatprep.subr.mxu0 0.0
    %534 = vmatpush1.msra.mxu0 0.0
    %535 = vmatprep.subr.mxu0 0.0
    %536 = vmatpush1.msra.mxu0 0.0
    %537 = vmatprep.subr.mxu0 0.0
    %538 = vmatpush1.msra.mxu0 0.0
    %539 = vmatprep.subr.mxu0 0.0
    %540 = vmatpush1.msra.mxu0 0.0
    %541 = vmatprep.subr.mxu0 0.0
    %542 = vmatpush1.msra.mxu0 0.0
    %543 = vmatprep.subr.mxu0 0.0
    %544 = vmatpush1.msra.mxu0 0.0
    %545 = vmatprep.subr.mxu0 0.0
    %546 = vmatpush1.msra.mxu0 0.0
    %547 = vmatprep.subr.mxu0 0.0
    %548 = vmatpush1.msra.mxu0 0.0
    %549 = vmatprep.subr.mxu0 0.0
    %550 = vmatpush1.msra.mxu0 0.0
    %551 = vmatprep.subr.mxu0 0.0
    %552 = vmatpush1.msra.mxu0 0.0
    %553 = vmatprep.subr.mxu0 0.0
    %554 = vmatpush1.msra.mxu0 0.0
    %555 = vmatprep.subr.mxu0 0.0
    %556 = vmatpush1.msra.mxu0 0.0
    %557 = vmatprep.subr.mxu0 0.0
    %558 = vmatpush1.msra.mxu0 0.0
    %559 = vmatprep.subr.mxu0 0.0
    %560 = vmatpush1.msra.mxu0 0.0
    %561 = vmatprep.mubr.f32.mxu0 0.0
    %v562 = vand.u32 %v36, 4294901760
    %563 = vmatmul.mubr.f32.gmra.mrb[0].mxu0 %v562
    %v564 = vpop.f32.mrb[0].mxu0
    %v565 = vadd.f32 %v481, %v564
    %v566 = vpop.f32.mrb[0].mxu0
    %567 = vmatprep.mubr.f32.mxu0 0.0
    %v568 = vand.u32 %v39, 4294901760
    %569 = vmatmul.mubr.f32.gmra.mrb[0].mxu0 %v568
    %v570 = vpop.f32.mrb[0].mxu0
    %v571 = vadd.f32 %v487, %v570
    %v572 = vpop.f32.mrb[0].mxu0
    %573 = vmatprep.mubr.f32.mxu0 0.0
    %v574 = vand.u32 %v42, 4294901760
    %575 = vmatmul.mubr.f32.gmra.mrb[0].mxu0 %v574
    %v576 = vpop.f32.mrb[0].mxu0
    %v577 = vadd.f32 %v493, %v576
    %v578 = vpop.f32.mrb[0].mxu0
    %579 = vdwg.mxu0
    %v580 = vmax.f32 %v565, 0.0
    %v581 = vmax.f32 %v571, 0.0
    %v582 = vmax.f32 %v577, 0.0
    %v583 = vld [vmem:[%s1 + $0x18] sm:$0xff]
    %v584 = vld [vmem:[%s1 + $0x20] sm:$0x3]
    %v585 = vld [vmem:[%s1 + $0x48] sm:$0xff]
    %v586 = vld [vmem:[%s1 + $0x50] sm:$0x3]
    %588 = vset.pattern.permute.xlu0 0
    %589 = vperm.xlu0 %588, %v585
    %v590 = vpop.permute.xlu0 %589
    %593 = vset.pattern.permute.xlu0 0
    %594 = vperm.xlu0 %593, %v586
    %v595 = vpop.permute.xlu0 %594
    %vm597 = vcmask 162816
    %v599 = vsel %vm597, %v583, 0
    %v602 = vsel %vm597, %v584, 0
    %v605 = vsel %vm44, %v582, 0
    %607 = vmatprep.subr.mxu0 0.0
    %v608 = vand.u32 %v580, 4294901760
    %609 = vmatpush1.msra.mxu0 %v608
    %610 = vmatprep.subr.mxu0 0.0
    %v611 = vand.u32 %v581, 4294901760
    %612 = vmatpush1.msra.mxu0 %v611
    %613 = vmatprep.subr.mxu0 0.0
    %v614 = vand.u32 %v605, 4294901760
    %615 = vmatpush1.msra.mxu0 %v614
    %616 = vmatprep.subr.mxu0 0.0
    %617 = vmatpush1.msra.mxu0 0.0
    %618 = vmatprep.subr.mxu0 0.0
    %619 = vmatpush1.msra.mxu0 0.0
    %620 = vmatprep.subr.mxu0 0.0
    %621 = vmatpush1.msra.mxu0 0.0
    %622 = vmatprep.subr.mxu0 0.0
    %623 = vmatpush1.msra.mxu0 0.0
    %624 = vmatprep.subr.mxu0 0.0
    %625 = vmatpush1.msra.mxu0 0.0
    %626 = vmatprep.subr.mxu0 0.0
    %627 = vmatpush1.msra.mxu0 0.0
    %628 = vmatprep.subr.mxu0 0.0
    %629 = vmatpush1.msra.mxu0 0.0
    %630 = vmatprep.subr.mxu0 0.0
    %631 = vmatpush1.msra.mxu0 0.0
    %632 = vmatprep.subr.mxu0 0.0
    %633 = vmatpush1.msra.mxu0 0.0
    %634 = vmatprep.subr.mxu0 0.0
    %635 = vmatpush1.msra.mxu0 0.0
    %636 = vmatprep.subr.mxu0 0.0
    %637 = vmatpush1.msra.mxu0 0.0
    %638 = vmatprep.subr.mxu0 0.0
    %639 = vmatpush1.msra.mxu0 0.0
    %640 = vmatprep.subr.mxu0 0.0
    %641 = vmatpush1.msra.mxu0 0.0
    %642 = vmatprep.subr.mxu0 0.0
    %643 = vmatpush1.msra.mxu0 0.0
    %644 = vmatprep.subr.mxu0 0.0
    %645 = vmatpush1.msra.mxu0 0.0
    %646 = vmatprep.subr.mxu0 0.0
    %647 = vmatpush1.msra.mxu0 0.0
    %648 = vmatprep.subr.mxu0 0.0
    %649 = vmatpush1.msra.mxu0 0.0
    %650 = vmatprep.subr.mxu0 0.0
    %651 = vmatpush1.msra.mxu0 0.0
    %652 = vmatprep.subr.mxu0 0.0
    %653 = vmatpush1.msra.mxu0 0.0
    %654 = vmatprep.subr.mxu0 0.0
    %655 = vmatpush1.msra.mxu0 0.0
    %656 = vmatprep.subr.mxu0 0.0
    %657 = vmatpush1.msra.mxu0 0.0
    %658 = vmatprep.subr.mxu0 0.0
    %659 = vmatpush1.msra.mxu0 0.0
    %660 = vmatprep.subr.mxu0 0.0
    %661 = vmatpush1.msra.mxu0 0.0
    %662 = vmatprep.subr.mxu0 0.0
    %663 = vmatpush1.msra.mxu0 0.0
    %664 = vmatprep.subr.mxu0 0.0
    %665 = vmatpush1.msra.mxu0 0.0
    %666 = vmatprep.subr.mxu0 0.0
    %667 = vmatpush1.msra.mxu0 0.0
    %668 = vmatprep.subr.mxu0 0.0
    %669 = vmatpush1.msra.mxu0 0.0
    %670 = vmatprep.subr.mxu0 0.0
    %671 = vmatpush1.msra.mxu0 0.0
    %672 = vmatprep.subr.mxu0 0.0
    %673 = vmatpush1.msra.mxu0 0.0
    %674 = vmatprep.mubr.f32.mxu0 0.0
    %v675 = vand.u32 %v599, 4294901760
    %v676 = vsub.f32 %v599, %v675
    %v677 = vand.u32 %v676, 4294901760
    %v678 = vsub.f32 %v676, %v677
    %v679 = vand.u32 %v678, 4294901760
    %680 = vmatmul.mubr.f32.gmra.mrb[0].mxu0 %v679
    %v681 = vpop.f32.mrb[0].mxu0
    %v682 = vadd.f32 %v590, %v681
    %v683 = vpop.f32.mrb[0].mxu0
    %684 = vmatprep.mubr.f32.mxu0 0.0
    %v685 = vand.u32 %v602, 4294901760
    %v686 = vsub.f32 %v602, %v685
    %v687 = vand.u32 %v686, 4294901760
    %v688 = vsub.f32 %v686, %v687
    %v689 = vand.u32 %v688, 4294901760
    %690 = vmatmul.mubr.f32.gmra.mrb[0].mxu0 %v689
    %v691 = vpop.f32.mrb[0].mxu0
    %v692 = vadd.f32 %v595, %v691
    %v693 = vpop.f32.mrb[0].mxu0
    %694 = vdwg.mxu0
    %695 = vmatprep.subr.mxu0 0.0
    %v696 = vand.u32 %v580, 4294901760
    %v697 = vsub.f32 %v580, %v696
    %v698 = vand.u32 %v697, 4294901760
    %v699 = vsub.f32 %v697, %v698
    %v700 = vand.u32 %v699, 4294901760
    %701 = vmatpush1.msra.mxu0 %v700
    %702 = vmatprep.subr.mxu0 0.0
    %v703 = vand.u32 %v581, 4294901760
    %v704 = vsub.f32 %v581, %v703
    %v705 = vand.u32 %v704, 4294901760
    %v706 = vsub.f32 %v704, %v705
    %v707 = vand.u32 %v706, 4294901760
    %708 = vmatpush1.msra.mxu0 %v707
    %709 = vmatprep.subr.mxu0 0.0
    %v710 = vand.u32 %v605, 4294901760
    %v711 = vsub.f32 %v605, %v710
    %v712 = vand.u32 %v711, 4294901760
    %v713 = vsub.f32 %v711, %v712
    %v714 = vand.u32 %v713, 4294901760
    %715 = vmatpush1.msra.mxu0 %v714
    %716 = vmatprep.subr.mxu0 0.0
    %717 = vmatpush1.msra.mxu0 0.0
    %718 = vmatprep.subr.mxu0 0.0
    %719 = vmatpush1.msra.mxu0 0.0
    %720 = vmatprep.subr.mxu0 0.0
    %721 = vmatpush1.msra.mxu0 0.0
    %722 = vmatprep.subr.mxu0 0.0
    %723 = vmatpush1.msra.mxu0 0.0
    %724 = vmatprep.subr.mxu0 0.0
    %725 = vmatpush1.msra.mxu0 0.0
    %726 = vmatprep.subr.mxu0 0.0
    %727 = vmatpush1.msra.mxu0 0.0
    %728 = vmatprep.subr.mxu0 0.0
    %729 = vmatpush1.msra.mxu0 0.0
    %730 = vmatprep.subr.mxu0 0.0
    %731 = vmatpush1.msra.mxu0 0.0
    %732 = vmatprep.subr.mxu0 0.0
    %733 = vmatpush1.msra.mxu0 0.0
    %734 = vmatprep.subr.mxu0 0.0
    %735 = vmatpush1.msra.mxu0 0.0
    %736 = vmatprep.subr.mxu0 0.0
    %737 = vmatpush1.msra.mxu0 0.0
    %738 = vmatprep.subr.mxu0 0.0
    %739 = vmatpush1.msra.mxu0 0.0
    %740 = vmatprep.subr.mxu0 0.0
    %741 = vmatpush1.msra.mxu0 0.0
    %742 = vmatprep.subr.mxu0 0.0
    %743 = vmatpush1.msra.mxu0 0.0
    %744 = vmatprep.subr.mxu0 0.0
    %745 = vmatpush1.msra.mxu0 0.0
    %746 = vmatprep.subr.mxu0 0.0
    %747 = vmatpush1.msra.mxu0 0.0
    %748 = vmatprep.subr.mxu0 0.0
    %749 = vmatpush1.msra.mxu0 0.0
    %750 = vmatprep.subr.mxu0 0.0
    %751 = vmatpush1.msra.mxu0 0.0
    %752 = vmatprep.subr.mxu0 0.0
    %753 = vmatpush1.msra.mxu0 0.0
    %754 = vmatprep.subr.mxu0 0.0
    %755 = vmatpush1.msra.mxu0 0.0
    %756 = vmatprep.subr.mxu0 0.0
    %757 = vmatpush1.msra.mxu0 0.0
    %758 = vmatprep.subr.mxu0 0.0
    %759 = vmatpush1.msra.mxu0 0.0
    %760 = vmatprep.subr.mxu0 0.0
    %761 = vmatpush1.msra.mxu0 0.0
    %762 = vmatprep.subr.mxu0 0.0
    %763 = vmatpush1.msra.mxu0 0.0
    %764 = vmatprep.subr.mxu0 0.0
    %765 = vmatpush1.msra.mxu0 0.0
    %766 = vmatprep.subr.mxu0 0.0
    %767 = vmatpush1.msra.mxu0 0.0
    %768 = vmatprep.subr.mxu0 0.0
    %769 = vmatpush1.msra.mxu0 0.0
    %770 = vmatprep.subr.mxu0 0.0
    %771 = vmatpush1.msra.mxu0 0.0
    %772 = vmatprep.subr.mxu0 0.0
    %773 = vmatpush1.msra.mxu0 0.0
    %774 = vmatprep.mubr.f32.mxu0 0.0
    %v775 = vand.u32 %v599, 4294901760
    %776 = vmatmul.mubr.f32.gmra.mrb[0].mxu0 %v775
    %v777 = vpop.f32.mrb[0].mxu0
    %v778 = vadd.f32 %v682, %v777
    %v779 = vpop.f32.mrb[0].mxu0
    %780 = vmatprep.mubr.f32.mxu0 0.0
    %v781 = vand.u32 %v602, 4294901760
    %782 = vmatmul.mubr.f32.gmra.mrb[0].mxu0 %v781
    %v783 = vpop.f32.mrb[0].mxu0
    %v784 = vadd.f32 %v692, %v783
    %v785 = vpop.f32.mrb[0].mxu0
    %786 = vdwg.mxu0
    %787 = vmatprep.subr.mxu0 0.0
    %v788 = vand.u32 %v580, 4294901760
    %v789 = vsub.f32 %v580, %v788
    %790 = vmatpush1.msra.mxu0 %v789
    %791 = vmatprep.subr.mxu0 0.0
    %v792 = vand.u32 %v581, 4294901760
    %v793 = vsub.f32 %v581, %v792
    %794 = vmatpush1.msra.mxu0 %v793
    %795 = vmatprep.subr.mxu0 0.0
    %v796 = vand.u32 %v605, 4294901760
    %v797 = vsub.f32 %v605, %v796
    %798 = vmatpush1.msra.mxu0 %v797
    %799 = vmatprep.subr.mxu0 0.0
    %800 = vmatpush1.msra.mxu0 0.0
    %801 = vmatprep.subr.mxu0 0.0
    %802 = vmatpush1.msra.mxu0 0.0
    %803 = vmatprep.subr.mxu0 0.0
    %804 = vmatpush1.msra.mxu0 0.0
    %805 = vmatprep.subr.mxu0 0.0
    %806 = vmatpush1.msra.mxu0 0.0
    %807 = vmatprep.subr.mxu0 0.0
    %808 = vmatpush1.msra.mxu0 0.0
    %809 = vmatprep.subr.mxu0 0.0
    %810 = vmatpush1.msra.mxu0 0.0
    %811 = vmatprep.subr.mxu0 0.0
    %812 = vmatpush1.msra.mxu0 0.0
    %813 = vmatprep.subr.mxu0 0.0
    %814 = vmatpush1.msra.mxu0 0.0
    %815 = vmatprep.subr.mxu0 0.0
    %816 = vmatpush1.msra.mxu0 0.0
    %817 = vmatprep.subr.mxu0 0.0
    %818 = vmatpush1.msra.mxu0 0.0
    %819 = vmatprep.subr.mxu0 0.0
    %820 = vmatpush1.msra.mxu0 0.0
    %821 = vmatprep.subr.mxu0 0.0
    %822 = vmatpush1.msra.mxu0 0.0
    %823 = vmatprep.subr.mxu0 0.0
    %824 = vmatpush1.msra.mxu0 0.0
    %825 = vmatprep.subr.mxu0 0.0
    %826 = vmatpush1.msra.mxu0 0.0
    %827 = vmatprep.subr.mxu0 0.0
    %828 = vmatpush1.msra.mxu0 0.0
    %829 = vmatprep.subr.mxu0 0.0
    %830 = vmatpush1.msra.mxu0 0.0
    %831 = vmatprep.subr.mxu0 0.0
    %832 = vmatpush1.msra.mxu0 0.0
    %833 = vmatprep.subr.mxu0 0.0
    %834 = vmatpush1.msra.mxu0 0.0
    %835 = vmatprep.subr.mxu0 0.0
    %836 = vmatpush1.msra.mxu0 0.0
    %837 = vmatprep.subr.mxu0 0.0
    %838 = vmatpush1.msra.mxu0 0.0
    %839 = vmatprep.subr.mxu0 0.0
    %840 = vmatpush1.msra.mxu0 0.0
    %841 = vmatprep.subr.mxu0 0.0
    %842 = vmatpush1.msra.mxu0 0.0
    %843 = vmatprep.subr.mxu0 0.0
    %844 = vmatpush1.msra.mxu0 0.0
    %845 = vmatprep.subr.mxu0 0.0
    %846 = vmatpush1.msra.mxu0 0.0
    %847 = vmatprep.subr.mxu0 0.0
    %848 = vmatpush1.msra.mxu0 0.0
    %849 = vmatprep.subr.mxu0 0.0
    %850 = vmatpush1.msra.mxu0 0.0
    %851 = vmatprep.subr.mxu0 0.0
    %852 = vmatpush1.msra.mxu0 0.0
    %853 = vmatprep.subr.mxu0 0.0
    %854 = vmatpush1.msra.mxu0 0.0
    %855 = vmatprep.subr.mxu0 0.0
    %856 = vmatpush1.msra.mxu0 0.0
    %857 = vmatprep.mubr.f32.mxu0 0.0
    %v858 = vand.u32 %v599, 4294901760
    %v859 = vsub.f32 %v599, %v858
    %860 = vmatmul.mubr.f32.gmra.mrb[0].mxu0 %v859
    %v861 = vpop.f32.mrb[0].mxu0
    %v862 = vadd.f32 %v778, %v861
    %v863 = vpop.f32.mrb[0].mxu0
    %864 = vmatprep.mubr.f32.mxu0 0.0
    %v865 = vand.u32 %v602, 4294901760
    %v866 = vsub.f32 %v602, %v865
    %867 = vmatmul.mubr.f32.gmra.mrb[0].mxu0 %v866
    %v868 = vpop.f32.mrb[0].mxu0
    %v869 = vadd.f32 %v784, %v868
    %v870 = vpop.f32.mrb[0].mxu0
    %871 = vdwg.mxu0
    %872 = vmatprep.subr.mxu0 0.0
    %v873 = vand.u32 %v580, 4294901760
    %874 = vmatpush1.msra.mxu0 %v873
    %875 = vmatprep.subr.mxu0 0.0
    %v876 = vand.u32 %v581, 4294901760
    %877 = vmatpush1.msra.mxu0 %v876
    %878 = vmatprep.subr.mxu0 0.0
    %v879 = vand.u32 %v605, 4294901760
    %880 = vmatpush1.msra.mxu0 %v879
    %881 = vmatprep.subr.mxu0 0.0
    %882 = vmatpush1.msra.mxu0 0.0
    %883 = vmatprep.subr.mxu0 0.0
    %884 = vmatpush1.msra.mxu0 0.0
    %885 = vmatprep.subr.mxu0 0.0
    %886 = vmatpush1.msra.mxu0 0.0
    %887 = vmatprep.subr.mxu0 0.0
    %888 = vmatpush1.msra.mxu0 0.0
    %889 = vmatprep.subr.mxu0 0.0
    %890 = vmatpush1.msra.mxu0 0.0
    %891 = vmatprep.subr.mxu0 0.0
    %892 = vmatpush1.msra.mxu0 0.0
    %893 = vmatprep.subr.mxu0 0.0
    %894 = vmatpush1.msra.mxu0 0.0
    %895 = vmatprep.subr.mxu0 0.0
    %896 = vmatpush1.msra.mxu0 0.0
    %897 = vmatprep.subr.mxu0 0.0
    %898 = vmatpush1.msra.mxu0 0.0
    %899 = vmatprep.subr.mxu0 0.0
    %900 = vmatpush1.msra.mxu0 0.0
    %901 = vmatprep.subr.mxu0 0.0
    %902 = vmatpush1.msra.mxu0 0.0
    %903 = vmatprep.subr.mxu0 0.0
    %904 = vmatpush1.msra.mxu0 0.0
    %905 = vmatprep.subr.mxu0 0.0
    %906 = vmatpush1.msra.mxu0 0.0
    %907 = vmatprep.subr.mxu0 0.0
    %908 = vmatpush1.msra.mxu0 0.0
    %909 = vmatprep.subr.mxu0 0.0
    %910 = vmatpush1.msra.mxu0 0.0
    %911 = vmatprep.subr.mxu0 0.0
    %912 = vmatpush1.msra.mxu0 0.0
    %913 = vmatprep.subr.mxu0 0.0
    %914 = vmatpush1.msra.mxu0 0.0
    %915 = vmatprep.subr.mxu0 0.0
    %916 = vmatpush1.msra.mxu0 0.0
    %917 = vmatprep.subr.mxu0 0.0
    %918 = vmatpush1.msra.mxu0 0.0
    %919 = vmatprep.subr.mxu0 0.0
    %920 = vmatpush1.msra.mxu0 0.0
    %921 = vmatprep.subr.mxu0 0.0
    %922 = vmatpush1.msra.mxu0 0.0
    %923 = vmatprep.subr.mxu0 0.0
    %924 = vmatpush1.msra.mxu0 0.0
    %925 = vmatprep.subr.mxu0 0.0
    %926 = vmatpush1.msra.mxu0 0.0
    %927 = vmatprep.subr.mxu0 0.0
    %928 = vmatpush1.msra.mxu0 0.0
    %929 = vmatprep.subr.mxu0 0.0
    %930 = vmatpush1.msra.mxu0 0.0
    %931 = vmatprep.subr.mxu0 0.0
    %932 = vmatpush1.msra.mxu0 0.0
    %933 = vmatprep.subr.mxu0 0.0
    %934 = vmatpush1.msra.mxu0 0.0
    %935 = vmatprep.subr.mxu0 0.0
    %936 = vmatpush1.msra.mxu0 0.0
    %937 = vmatprep.subr.mxu0 0.0
    %938 = vmatpush1.msra.mxu0 0.0
    %939 = vmatprep.mubr.f32.mxu0 0.0
    %v940 = vand.u32 %v599, 4294901760
    %v941 = vsub.f32 %v599, %v940
    %v942 = vand.u32 %v941, 4294901760
    %943 = vmatmul.mubr.f32.gmra.mrb[0].mxu0 %v942
    %v944 = vpop.f32.mrb[0].mxu0
    %v945 = vadd.f32 %v862, %v944
    %v946 = vpop.f32.mrb[0].mxu0
    %947 = vmatprep.mubr.f32.mxu0 0.0
    %v948 = vand.u32 %v602, 4294901760
    %v949 = vsub.f32 %v602, %v948
    %v950 = vand.u32 %v949, 4294901760
    %951 = vmatmul.mubr.f32.gmra.mrb[0].mxu0 %v950
    %v952 = vpop.f32.mrb[0].mxu0
    %v953 = vadd.f32 %v869, %v952
    %v954 = vpop.f32.mrb[0].mxu0
    %955 = vdwg.mxu0
    %956 = vmatprep.subr.mxu0 0.0
    %v957 = vand.u32 %v580, 4294901760
    %v958 = vsub.f32 %v580, %v957
    %v959 = vand.u32 %v958, 4294901760
    %960 = vmatpush1.msra.mxu0 %v959
    %961 = vmatprep.subr.mxu0 0.0
    %v962 = vand.u32 %v581, 4294901760
    %v963 = vsub.f32 %v581, %v962
    %v964 = vand.u32 %v963, 4294901760
    %965 = vmatpush1.msra.mxu0 %v964
    %966 = vmatprep.subr.mxu0 0.0
    %v967 = vand.u32 %v605, 4294901760
    %v968 = vsub.f32 %v605, %v967
    %v969 = vand.u32 %v968, 4294901760
    %970 = vmatpush1.msra.mxu0 %v969
    %971 = vmatprep.subr.mxu0 0.0
    %972 = vmatpush1.msra.mxu0 0.0
    %973 = vmatprep.subr.mxu0 0.0
    %974 = vmatpush1.msra.mxu0 0.0
    %975 = vmatprep.subr.mxu0 0.0
    %976 = vmatpush1.msra.mxu0 0.0
    %977 = vmatprep.subr.mxu0 0.0
    %978 = vmatpush1.msra.mxu0 0.0
    %979 = vmatprep.subr.mxu0 0.0
    %980 = vmatpush1.msra.mxu0 0.0
    %981 = vmatprep.subr.mxu0 0.0
    %982 = vmatpush1.msra.mxu0 0.0
    %983 = vmatprep.subr.mxu0 0.0
    %984 = vmatpush1.msra.mxu0 0.0
    %985 = vmatprep.subr.mxu0 0.0
    %986 = vmatpush1.msra.mxu0 0.0
    %987 = vmatprep.subr.mxu0 0.0
    %988 = vmatpush1.msra.mxu0 0.0
    %989 = vmatprep.subr.mxu0 0.0
    %990 = vmatpush1.msra.mxu0 0.0
    %991 = vmatprep.subr.mxu0 0.0
    %992 = vmatpush1.msra.mxu0 0.0
    %993 = vmatprep.subr.mxu0 0.0
    %994 = vmatpush1.msra.mxu0 0.0
    %995 = vmatprep.subr.mxu0 0.0
    %996 = vmatpush1.msra.mxu0 0.0
    %997 = vmatprep.subr.mxu0 0.0
    %998 = vmatpush1.msra.mxu0 0.0
    %999 = vmatprep.subr.mxu0 0.0
    %1000 = vmatpush1.msra.mxu0 0.0
    %1001 = vmatprep.subr.mxu0 0.0
    %1002 = vmatpush1.msra.mxu0 0.0
    %1003 = vmatprep.subr.mxu0 0.0
    %1004 = vmatpush1.msra.mxu0 0.0
    %1005 = vmatprep.subr.mxu0 0.0
    %1006 = vmatpush1.msra.mxu0 0.0
    %1007 = vmatprep.subr.mxu0 0.0
    %1008 = vmatpush1.msra.mxu0 0.0
    %1009 = vmatprep.subr.mxu0 0.0
    %1010 = vmatpush1.msra.mxu0 0.0
    %1011 = vmatprep.subr.mxu0 0.0
    %1012 = vmatpush1.msra.mxu0 0.0
    %1013 = vmatprep.subr.mxu0 0.0
    %1014 = vmatpush1.msra.mxu0 0.0
    %1015 = vmatprep.subr.mxu0 0.0
    %1016 = vmatpush1.msra.mxu0 0.0
    %1017 = vmatprep.subr.mxu0 0.0
    %1018 = vmatpush1.msra.mxu0 0.0
    %1019 = vmatprep.subr.mxu0 0.0
    %1020 = vmatpush1.msra.mxu0 0.0
    %1021 = vmatprep.subr.mxu0 0.0
    %1022 = vmatpush1.msra.mxu0 0.0
    %1023 = vmatprep.subr.mxu0 0.0
    %1024 = vmatpush1.msra.mxu0 0.0
    %1025 = vmatprep.subr.mxu0 0.0
    %1026 = vmatpush1.msra.mxu0 0.0
    %1027 = vmatprep.subr.mxu0 0.0
    %1028 = vmatpush1.msra.mxu0 0.0
    %1029 = vmatprep.mubr.f32.mxu0 0.0
    %v1030 = vand.u32 %v599, 4294901760
    %1031 = vmatmul.mubr.f32.gmra.mrb[0].mxu0 %v1030
    %v1032 = vpop.f32.mrb[0].mxu0
    %v1033 = vadd.f32 %v945, %v1032
    %v1034 = vpop.f32.mrb[0].mxu0
    %1035 = vmatprep.mubr.f32.mxu0 0.0
    %v1036 = vand.u32 %v602, 4294901760
    %1037 = vmatmul.mubr.f32.gmra.mrb[0].mxu0 %v1036
    %v1038 = vpop.f32.mrb[0].mxu0
    %v1039 = vadd.f32 %v953, %v1038
    %v1040 = vpop.f32.mrb[0].mxu0
    %1041 = vdwg.mxu0
    %1042 = vmatprep.subr.mxu0 0.0
    %v1043 = vand.u32 %v580, 4294901760
    %1044 = vmatpush1.msra.mxu0 %v1043
    %1045 = vmatprep.subr.mxu0 0.0
    %v1046 = vand.u32 %v581, 4294901760
    %1047 = vmatpush1.msra.mxu0 %v1046
    %1048 = vmatprep.subr.mxu0 0.0
    %v1049 = vand.u32 %v605, 4294901760
    %1050 = vmatpush1.msra.mxu0 %v1049
    %1051 = vmatprep.subr.mxu0 0.0
    %1052 = vmatpush1.msra.mxu0 0.0
    %1053 = vmatprep.subr.mxu0 0.0
    %1054 = vmatpush1.msra.mxu0 0.0
    %1055 = vmatprep.subr.mxu0 0.0
    %1056 = vmatpush1.msra.mxu0 0.0
    %1057 = vmatprep.subr.mxu0 0.0
    %1058 = vmatpush1.msra.mxu0 0.0
    %1059 = vmatprep.subr.mxu0 0.0
    %1060 = vmatpush1.msra.mxu0 0.0
    %1061 = vmatprep.subr.mxu0 0.0
    %1062 = vmatpush1.msra.mxu0 0.0
    %1063 = vmatprep.subr.mxu0 0.0
    %1064 = vmatpush1.msra.mxu0 0.0
    %1065 = vmatprep.subr.mxu0 0.0
    %1066 = vmatpush1.msra.mxu0 0.0
    %1067 = vmatprep.subr.mxu0 0.0
    %1068 = vmatpush1.msra.mxu0 0.0
    %1069 = vmatprep.subr.mxu0 0.0
    %1070 = vmatpush1.msra.mxu0 0.0
    %1071 = vmatprep.subr.mxu0 0.0
    %1072 = vmatpush1.msra.mxu0 0.0
    %1073 = vmatprep.subr.mxu0 0.0
    %1074 = vmatpush1.msra.mxu0 0.0
    %1075 = vmatprep.subr.mxu0 0.0
    %1076 = vmatpush1.msra.mxu0 0.0
    %1077 = vmatprep.subr.mxu0 0.0
    %1078 = vmatpush1.msra.mxu0 0.0
    %1079 = vmatprep.subr.mxu0 0.0
    %1080 = vmatpush1.msra.mxu0 0.0
    %1081 = vmatprep.subr.mxu0 0.0
    %1082 = vmatpush1.msra.mxu0 0.0
    %1083 = vmatprep.subr.mxu0 0.0
    %1084 = vmatpush1.msra.mxu0 0.0
    %1085 = vmatprep.subr.mxu0 0.0
    %1086 = vmatpush1.msra.mxu0 0.0
    %1087 = vmatprep.subr.mxu0 0.0
    %1088 = vmatpush1.msra.mxu0 0.0
    %1089 = vmatprep.subr.mxu0 0.0
    %1090 = vmatpush1.msra.mxu0 0.0
    %1091 = vmatprep.subr.mxu0 0.0
    %1092 = vmatpush1.msra.mxu0 0.0
    %1093 = vmatprep.subr.mxu0 0.0
    %1094 = vmatpush1.msra.mxu0 0.0
    %1095 = vmatprep.subr.mxu0 0.0
    %1096 = vmatpush1.msra.mxu0 0.0
    %1097 = vmatprep.subr.mxu0 0.0
    %1098 = vmatpush1.msra.mxu0 0.0
    %1099 = vmatprep.subr.mxu0 0.0
    %1100 = vmatpush1.msra.mxu0 0.0
    %1101 = vmatprep.subr.mxu0 0.0
    %1102 = vmatpush1.msra.mxu0 0.0
    %1103 = vmatprep.subr.mxu0 0.0
    %1104 = vmatpush1.msra.mxu0 0.0
    %1105 = vmatprep.subr.mxu0 0.0
    %1106 = vmatpush1.msra.mxu0 0.0
    %1107 = vmatprep.subr.mxu0 0.0
    %1108 = vmatpush1.msra.mxu0 0.0
    %1109 = vmatprep.mubr.f32.mxu0 0.0
    %v1110 = vand.u32 %v599, 4294901760
    %1111 = vmatmul.mubr.f32.gmra.mrb[0].mxu0 %v1110
    %v1112 = vpop.f32.mrb[0].mxu0
    %v1113 = vadd.f32 %v1033, %v1112
    %v1114 = vpop.f32.mrb[0].mxu0
    %1115 = vmatprep.mubr.f32.mxu0 0.0
    %v1116 = vand.u32 %v602, 4294901760
    %1117 = vmatmul.mubr.f32.gmra.mrb[0].mxu0 %v1116
    %v1118 = vpop.f32.mrb[0].mxu0
    %v1119 = vadd.f32 %v1039, %v1118
    %v1120 = vpop.f32.mrb[0].mxu0
    %1121 = vdwg.mxu0
    %v1122 = vmax.f32 %v1113, 0.0
    %v1123 = vmax.f32 %v1119, 0.0
    %v1124 = vld [vmem:[%s1 + $0x28] sm:$0x7]
    %v1125 = vld [vmem:[%s1 + $0x58] sm:$0x7]
    %1127 = vset.pattern.permute.xlu0 0
    %1128 = vperm.xlu0 %1127, %v1125
    %v1129 = vpop.permute.xlu0 %1128
    %vm1131 = vcmask 80896
    %v1133 = vsel %vm1131, %v1124, 0
    %vm1135 = vcmask 1041408
    %v1137 = vsel %vm1135, %v1123, 0
    %1139 = vmatprep.subr.mxu0 0.0
    %v1140 = vand.u32 %v1122, 4294901760
    %1141 = vmatpush1.msra.mxu0 %v1140
    %1142 = vmatprep.subr.mxu0 0.0
    %v1143 = vand.u32 %v1137, 4294901760
    %1144 = vmatpush1.msra.mxu0 %v1143
    %1145 = vmatprep.subr.mxu0 0.0
    %1146 = vmatpush1.msra.mxu0 0.0
    %1147 = vmatprep.subr.mxu0 0.0
    %1148 = vmatpush1.msra.mxu0 0.0
    %1149 = vmatprep.subr.mxu0 0.0
    %1150 = vmatpush1.msra.mxu0 0.0
    %1151 = vmatprep.subr.mxu0 0.0
    %1152 = vmatpush1.msra.mxu0 0.0
    %1153 = vmatprep.subr.mxu0 0.0
    %1154 = vmatpush1.msra.mxu0 0.0
    %1155 = vmatprep.subr.mxu0 0.0
    %1156 = vmatpush1.msra.mxu0 0.0
    %1157 = vmatprep.subr.mxu0 0.0
    %1158 = vmatpush1.msra.mxu0 0.0
    %1159 = vmatprep.subr.mxu0 0.0
    %1160 = vmatpush1.msra.mxu0 0.0
    %1161 = vmatprep.subr.mxu0 0.0
    %1162 = vmatpush1.msra.mxu0 0.0
    %1163 = vmatprep.subr.mxu0 0.0
    %1164 = vmatpush1.msra.mxu0 0.0
    %1165 = vmatprep.subr.mxu0 0.0
    %1166 = vmatpush1.msra.mxu0 0.0
    %1167 = vmatprep.subr.mxu0 0.0
    %1168 = vmatpush1.msra.mxu0 0.0
    %1169 = vmatprep.subr.mxu0 0.0
    %1170 = vmatpush1.msra.mxu0 0.0
    %1171 = vmatprep.subr.mxu0 0.0
    %1172 = vmatpush1.msra.mxu0 0.0
    %1173 = vmatprep.subr.mxu0 0.0
    %1174 = vmatpush1.msra.mxu0 0.0
    %1175 = vmatprep.subr.mxu0 0.0
    %1176 = vmatpush1.msra.mxu0 0.0
    %1177 = vmatprep.subr.mxu0 0.0
    %1178 = vmatpush1.msra.mxu0 0.0
    %1179 = vmatprep.subr.mxu0 0.0
    %1180 = vmatpush1.msra.mxu0 0.0
    %1181 = vmatprep.subr.mxu0 0.0
    %1182 = vmatpush1.msra.mxu0 0.0
    %1183 = vmatprep.subr.mxu0 0.0
    %1184 = vmatpush1.msra.mxu0 0.0
    %1185 = vmatprep.subr.mxu0 0.0
    %1186 = vmatpush1.msra.mxu0 0.0
    %1187 = vmatprep.subr.mxu0 0.0
    %1188 = vmatpush1.msra.mxu0 0.0
    %1189 = vmatprep.subr.mxu0 0.0
    %1190 = vmatpush1.msra.mxu0 0.0
    %1191 = vmatprep.subr.mxu0 0.0
    %1192 = vmatpush1.msra.mxu0 0.0
    %1193 = vmatprep.subr.mxu0 0.0
    %1194 = vmatpush1.msra.mxu0 0.0
    %1195 = vmatprep.subr.mxu0 0.0
    %1196 = vmatpush1.msra.mxu0 0.0
    %1197 = vmatprep.subr.mxu0 0.0
    %1198 = vmatpush1.msra.mxu0 0.0
    %1199 = vmatprep.subr.mxu0 0.0
    %1200 = vmatpush1.msra.mxu0 0.0
    %1201 = vmatprep.subr.mxu0 0.0
    %1202 = vmatpush1.msra.mxu0 0.0
    %1203 = vmatprep.subr.mxu0 0.0
    %1204 = vmatpush1.msra.mxu0 0.0
    %1205 = vmatprep.mubr.f32.mxu0 0.0
    %v1206 = vand.u32 %v1133, 4294901760
    %v1207 = vsub.f32 %v1133, %v1206
    %v1208 = vand.u32 %v1207, 4294901760
    %v1209 = vsub.f32 %v1207, %v1208
    %v1210 = vand.u32 %v1209, 4294901760
    %1211 = vmatmul.mubr.f32.gmra.mrb[0].mxu0 %v1210
    %v1212 = vpop.f32.mrb[0].mxu0
    %v1213 = vadd.f32 %v1129, %v1212
    %v1214 = vpop.f32.mrb[0].mxu0
    %1215 = vdwg.mxu0
    %1216 = vmatprep.subr.mxu0 0.0
    %v1217 = vand.u32 %v1122, 4294901760
    %v1218 = vsub.f32 %v1122, %v1217
    %v1219 = vand.u32 %v1218, 4294901760
    %v1220 = vsub.f32 %v1218, %v1219
    %v1221 = vand.u32 %v1220, 4294901760
    %1222 = vmatpush1.msra.mxu0 %v1221
    %1223 = vmatprep.subr.mxu0 0.0
    %v1224 = vand.u32 %v1137, 4294901760
    %v1225 = vsub.f32 %v1137, %v1224
    %v1226 = vand.u32 %v1225, 4294901760
    %v1227 = vsub.f32 %v1225, %v1226
    %v1228 = vand.u32 %v1227, 4294901760
    %1229 = vmatpush1.msra.mxu0 %v1228
    %1230 = vmatprep.subr.mxu0 0.0
    %1231 = vmatpush1.msra.mxu0 0.0
    %1232 = vmatprep.subr.mxu0 0.0
    %1233 = vmatpush1.msra.mxu0 0.0
    %1234 = vmatprep.subr.mxu0 0.0
    %1235 = vmatpush1.msra.mxu0 0.0
    %1236 = vmatprep.subr.mxu0 0.0
    %1237 = vmatpush1.msra.mxu0 0.0
    %1238 = vmatprep.subr.mxu0 0.0
    %1239 = vmatpush1.msra.mxu0 0.0
    %1240 = vmatprep.subr.mxu0 0.0
    %1241 = vmatpush1.msra.mxu0 0.0
    %1242 = vmatprep.subr.mxu0 0.0
    %1243 = vmatpush1.msra.mxu0 0.0
    %1244 = vmatprep.subr.mxu0 0.0
    %1245 = vmatpush1.msra.mxu0 0.0
    %1246 = vmatprep.subr.mxu0 0.0
    %1247 = vmatpush1.msra.mxu0 0.0
    %1248 = vmatprep.subr.mxu0 0.0
    %1249 = vmatpush1.msra.mxu0 0.0
    %1250 = vmatprep.subr.mxu0 0.0
    %1251 = vmatpush1.msra.mxu0 0.0
    %1252 = vmatprep.subr.mxu0 0.0
    %1253 = vmatpush1.msra.mxu0 0.0
    %1254 = vmatprep.subr.mxu0 0.0
    %1255 = vmatpush1.msra.mxu0 0.0
    %1256 = vmatprep.subr.mxu0 0.0
    %1257 = vmatpush1.msra.mxu0 0.0
    %1258 = vmatprep.subr.mxu0 0.0
    %1259 = vmatpush1.msra.mxu0 0.0
    %1260 = vmatprep.subr.mxu0 0.0
    %1261 = vmatpush1.msra.mxu0 0.0
    %1262 = vmatprep.subr.mxu0 0.0
    %1263 = vmatpush1.msra.mxu0 0.0
    %1264 = vmatprep.subr.mxu0 0.0
    %1265 = vmatpush1.msra.mxu0 0.0
    %1266 = vmatprep.subr.mxu0 0.0
    %1267 = vmatpush1.msra.mxu0 0.0
    %1268 = vmatprep.subr.mxu0 0.0
    %1269 = vmatpush1.msra.mxu0 0.0
    %1270 = vmatprep.subr.mxu0 0.0
    %1271 = vmatpush1.msra.mxu0 0.0
    %1272 = vmatprep.subr.mxu0 0.0
    %1273 = vmatpush1.msra.mxu0 0.0
    %1274 = vmatprep.subr.mxu0 0.0
    %1275 = vmatpush1.msra.mxu0 0.0
    %1276 = vmatprep.subr.mxu0 0.0
    %1277 = vmatpush1.msra.mxu0 0.0
    %1278 = vmatprep.subr.mxu0 0.0
    %1279 = vmatpush1.msra.mxu0 0.0
    %1280 = vmatprep.subr.mxu0 0.0
    %1281 = vmatpush1.msra.mxu0 0.0
    %1282 = vmatprep.subr.mxu0 0.0
    %1283 = vmatpush1.msra.mxu0 0.0
    %1284 = vmatprep.subr.mxu0 0.0
    %1285 = vmatpush1.msra.mxu0 0.0
    %1286 = vmatprep.subr.mxu0 0.0
    %1287 = vmatpush1.msra.mxu0 0.0
    %1288 = vmatprep.subr.mxu0 0.0
    %1289 = vmatpush1.msra.mxu0 0.0
    %1290 = vmatprep.mubr.f32.mxu0 0.0
    %v1291 = vand.u32 %v1133, 4294901760
    %1292 = vmatmul.mubr.f32.gmra.mrb[0].mxu0 %v1291
    %v1293 = vpop.f32.mrb[0].mxu0
    %v1294 = vadd.f32 %v1213, %v1293
    %v1295 = vpop.f32.mrb[0].mxu0
    %1296 = vdwg.mxu0
    %1297 = vmatprep.subr.mxu0 0.0
    %v1298 = vand.u32 %v1122, 4294901760
    %v1299 = vsub.f32 %v1122, %v1298
    %1300 = vmatpush1.msra.mxu0 %v1299
    %1301 = vmatprep.subr.mxu0 0.0
    %v1302 = vand.u32 %v1137, 4294901760
    %v1303 = vsub.f32 %v1137, %v1302
    %1304 = vmatpush1.msra.mxu0 %v1303
    %1305 = vmatprep.subr.mxu0 0.0
    %1306 = vmatpush1.msra.mxu0 0.0
    %1307 = vmatprep.subr.mxu0 0.0
    %1308 = vmatpush1.msra.mxu0 0.0
    %1309 = vmatprep.subr.mxu0 0.0
    %1310 = vmatpush1.msra.mxu0 0.0
    %1311 = vmatprep.subr.mxu0 0.0
    %1312 = vmatpush1.msra.mxu0 0.0
    %1313 = vmatprep.subr.mxu0 0.0
    %1314 = vmatpush1.msra.mxu0 0.0
    %1315 = vmatprep.subr.mxu0 0.0
    %1316 = vmatpush1.msra.mxu0 0.0
    %1317 = vmatprep.subr.mxu0 0.0
    %1318 = vmatpush1.msra.mxu0 0.0
    %1319 = vmatprep.subr.mxu0 0.0
    %1320 = vmatpush1.msra.mxu0 0.0
    %1321 = vmatprep.subr.mxu0 0.0
    %1322 = vmatpush1.msra.mxu0 0.0
    %1323 = vmatprep.subr.mxu0 0.0
    %1324 = vmatpush1.msra.mxu0 0.0
    %1325 = vmatprep.subr.mxu0 0.0
    %1326 = vmatpush1.msra.mxu0 0.0
    %1327 = vmatprep.subr.mxu0 0.0
    %1328 = vmatpush1.msra.mxu0 0.0
    %1329 = vmatprep.subr.mxu0 0.0
    %1330 = vmatpush1.msra.mxu0 0.0
    %1331 = vmatprep.subr.mxu0 0.0
    %1332 = vmatpush1.msra.mxu0 0.0
    %1333 = vmatprep.subr.mxu0 0.0
    %1334 = vmatpush1.msra.mxu0 0.0
    %1335 = vmatprep.subr.mxu0 0.0
    %1336 = vmatpush1.msra.mxu0 0.0
    %1337 = vmatprep.subr.mxu0 0.0
    %1338 = vmatpush1.msra.mxu0 0.0
    %1339 = vmatprep.subr.mxu0 0.0
    %1340 = vmatpush1.msra.mxu0 0.0
    %1341 = vmatprep.subr.mxu0 0.0
    %1342 = vmatpush1.msra.mxu0 0.0
    %1343 = vmatprep.subr.mxu0 0.0
    %1344 = vmatpush1.msra.mxu0 0.0
    %1345 = vmatprep.subr.mxu0 0.0
    %1346 = vmatpush1.msra.mxu0 0.0
    %1347 = vmatprep.subr.mxu0 0.0
    %1348 = vmatpush1.msra.mxu0 0.0
    %1349 = vmatprep.subr.mxu0 0.0
    %1350 = vmatpush1.msra.mxu0 0.0
    %1351 = vmatprep.subr.mxu0 0.0
    %1352 = vmatpush1.msra.mxu0 0.0
    %1353 = vmatprep.subr.mxu0 0.0
    %1354 = vmatpush1.msra.mxu0 0.0
    %1355 = vmatprep.subr.mxu0 0.0
    %1356 = vmatpush1.msra.mxu0 0.0
    %1357 = vmatprep.subr.mxu0 0.0
    %1358 = vmatpush1.msra.mxu0 0.0
    %1359 = vmatprep.subr.mxu0 0.0
    %1360 = vmatpush1.msra.mxu0 0.0
    %1361 = vmatprep.subr.mxu0 0.0
    %1362 = vmatpush1.msra.mxu0 0.0
    %1363 = vmatprep.subr.mxu0 0.0
    %1364 = vmatpush1.msra.mxu0 0.0
    %1365 = vmatprep.mubr.f32.mxu0 0.0
    %v1366 = vand.u32 %v1133, 4294901760
    %v1367 = vsub.f32 %v1133, %v1366
    %1368 = vmatmul.mubr.f32.gmra.mrb[0].mxu0 %v1367
    %v1369 = vpop.f32.mrb[0].mxu0
    %v1370 = vadd.f32 %v1294, %v1369
    %v1371 = vpop.f32.mrb[0].mxu0
    %1372 = vdwg.mxu0
    %1373 = vmatprep.subr.mxu0 0.0
    %v1374 = vand.u32 %v1122, 4294901760
    %1375 = vmatpush1.msra.mxu0 %v1374
    %1376 = vmatprep.subr.mxu0 0.0
    %v1377 = vand.u32 %v1137, 4294901760
    %1378 = vmatpush1.msra.mxu0 %v1377
    %1379 = vmatprep.subr.mxu0 0.0
    %1380 = vmatpush1.msra.mxu0 0.0
    %1381 = vmatprep.subr.mxu0 0.0
    %1382 = vmatpush1.msra.mxu0 0.0
    %1383 = vmatprep.subr.mxu0 0.0
    %1384 = vmatpush1.msra.mxu0 0.0
    %1385 = vmatprep.subr.mxu0 0.0
    %1386 = vmatpush1.msra.mxu0 0.0
    %1387 = vmatprep.subr.mxu0 0.0
    %1388 = vmatpush1.msra.mxu0 0.0
    %1389 = vmatprep.subr.mxu0 0.0
    %1390 = vmatpush1.msra.mxu0 0.0
    %1391 = vmatprep.subr.mxu0 0.0
    %1392 = vmatpush1.msra.mxu0 0.0
    %1393 = vmatprep.subr.mxu0 0.0
    %1394 = vmatpush1.msra.mxu0 0.0
    %1395 = vmatprep.subr.mxu0 0.0
    %1396 = vmatpush1.msra.mxu0 0.0
    %1397 = vmatprep.subr.mxu0 0.0
    %1398 = vmatpush1.msra.mxu0 0.0
    %1399 = vmatprep.subr.mxu0 0.0
    %1400 = vmatpush1.msra.mxu0 0.0
    %1401 = vmatprep.subr.mxu0 0.0
    %1402 = vmatpush1.msra.mxu0 0.0
    %1403 = vmatprep.subr.mxu0 0.0
    %1404 = vmatpush1.msra.mxu0 0.0
    %1405 = vmatprep.subr.mxu0 0.0
    %1406 = vmatpush1.msra.mxu0 0.0
    %1407 = vmatprep.subr.mxu0 0.0
    %1408 = vmatpush1.msra.mxu0 0.0
    %1409 = vmatprep.subr.mxu0 0.0
    %1410 = vmatpush1.msra.mxu0 0.0
    %1411 = vmatprep.subr.mxu0 0.0
    %1412 = vmatpush1.msra.mxu0 0.0
    %1413 = vmatprep.subr.mxu0 0.0
    %1414 = vmatpush1.msra.mxu0 0.0
    %1415 = vmatprep.subr.mxu0 0.0
    %1416 = vmatpush1.msra.mxu0 0.0
    %1417 = vmatprep.subr.mxu0 0.0
    %1418 = vmatpush1.msra.mxu0 0.0
    %1419 = vmatprep.subr.mxu0 0.0
    %1420 = vmatpush1.msra.mxu0 0.0
    %1421 = vmatprep.subr.mxu0 0.0
    %1422 = vmatpush1.msra.mxu0 0.0
    %1423 = vmatprep.subr.mxu0 0.0
    %1424 = vmatpush1.msra.mxu0 0.0
    %1425 = vmatprep.subr.mxu0 0.0
    %1426 = vmatpush1.msra.mxu0 0.0
    %1427 = vmatprep.subr.mxu0 0.0
    %1428 = vmatpush1.msra.mxu0 0.0
    %1429 = vmatprep.subr.mxu0 0.0
    %1430 = vmatpush1.msra.mxu0 0.0
    %1431 = vmatprep.subr.mxu0 0.0
    %1432 = vmatpush1.msra.mxu0 0.0
    %1433 = vmatprep.subr.mxu0 0.0
    %1434 = vmatpush1.msra.mxu0 0.0
    %1435 = vmatprep.subr.mxu0 0.0
    %1436 = vmatpush1.msra.mxu0 0.0
    %1437 = vmatprep.subr.mxu0 0.0
    %1438 = vmatpush1.msra.mxu0 0.0
    %1439 = vmatprep.mubr.f32.mxu0 0.0
    %v1440 = vand.u32 %v1133, 4294901760
    %v1441 = vsub.f32 %v1133, %v1440
    %v1442 = vand.u32 %v1441, 4294901760
    %1443 = vmatmul.mubr.f32.gmra.mrb[0].mxu0 %v1442
    %v1444 = vpop.f32.mrb[0].mxu0
    %v1445 = vadd.f32 %v1370, %v1444
    %v1446 = vpop.f32.mrb[0].mxu0
    %1447 = vdwg.mxu0
    %1448 = vmatprep.subr.mxu0 0.0
    %v1449 = vand.u32 %v1122, 4294901760
    %v1450 = vsub.f32 %v1122, %v1449
    %v1451 = vand.u32 %v1450, 4294901760
    %1452 = vmatpush1.msra.mxu0 %v1451
    %1453 = vmatprep.subr.mxu0 0.0
    %v1454 = vand.u32 %v1137, 4294901760
    %v1455 = vsub.f32 %v1137, %v1454
    %v1456 = vand.u32 %v1455, 4294901760
    %1457 = vmatpush1.msra.mxu0 %v1456
    %1458 = vmatprep.subr.mxu0 0.0
    %1459 = vmatpush1.msra.mxu0 0.0
    %1460 = vmatprep.subr.mxu0 0.0
    %1461 = vmatpush1.msra.mxu0 0.0
    %1462 = vmatprep.subr.mxu0 0.0
    %1463 = vmatpush1.msra.mxu0 0.0
    %1464 = vmatprep.subr.mxu0 0.0
    %1465 = vmatpush1.msra.mxu0 0.0
    %1466 = vmatprep.subr.mxu0 0.0
    %1467 = vmatpush1.msra.mxu0 0.0
    %1468 = vmatprep.subr.mxu0 0.0
    %1469 = vmatpush1.msra.mxu0 0.0
    %1470 = vmatprep.subr.mxu0 0.0
    %1471 = vmatpush1.msra.mxu0 0.0
    %1472 = vmatprep.subr.mxu0 0.0
    %1473 = vmatpush1.msra.mxu0 0.0
    %1474 = vmatprep.subr.mxu0 0.0
    %1475 = vmatpush1.msra.mxu0 0.0
    %1476 = vmatprep.subr.mxu0 0.0
    %1477 = vmatpush1.msra.mxu0 0.0
    %1478 = vmatprep.subr.mxu0 0.0
    %1479 = vmatpush1.msra.mxu0 0.0
    %1480 = vmatprep.subr.mxu0 0.0
    %1481 = vmatpush1.msra.mxu0 0.0
    %1482 = vmatprep.subr.mxu0 0.0
    %1483 = vmatpush1.msra.mxu0 0.0
    %1484 = vmatprep.subr.mxu0 0.0
    %1485 = vmatpush1.msra.mxu0 0.0
    %1486 = vmatprep.subr.mxu0 0.0
    %1487 = vmatpush1.msra.mxu0 0.0
    %1488 = vmatprep.subr.mxu0 0.0
    %1489 = vmatpush1.msra.mxu0 0.0
    %1490 = vmatprep.subr.mxu0 0.0
    %1491 = vmatpush1.msra.mxu0 0.0
    %1492 = vmatprep.subr.mxu0 0.0
    %1493 = vmatpush1.msra.mxu0 0.0
    %1494 = vmatprep.subr.mxu0 0.0
    %1495 = vmatpush1.msra.mxu0 0.0
    %1496 = vmatprep.subr.mxu0 0.0
    %1497 = vmatpush1.msra.mxu0 0.0
    %1498 = vmatprep.subr.mxu0 0.0
    %1499 = vmatpush1.msra.mxu0 0.0
    %1500 = vmatprep.subr.mxu0 0.0
    %1501 = vmatpush1.msra.mxu0 0.0
    %1502 = vmatprep.subr.mxu0 0.0
    %1503 = vmatpush1.msra.mxu0 0.0
    %1504 = vmatprep.subr.mxu0 0.0
    %1505 = vmatpush1.msra.mxu0 0.0
    %1506 = vmatprep.subr.mxu0 0.0
    %1507 = vmatpush1.msra.mxu0 0.0
    %1508 = vmatprep.subr.mxu0 0.0
    %1509 = vmatpush1.msra.mxu0 0.0
    %1510 = vmatprep.subr.mxu0 0.0
    %1511 = vmatpush1.msra.mxu0 0.0
    %1512 = vmatprep.subr.mxu0 0.0
    %1513 = vmatpush1.msra.mxu0 0.0
    %1514 = vmatprep.subr.mxu0 0.0
    %1515 = vmatpush1.msra.mxu0 0.0
    %1516 = vmatprep.subr.mxu0 0.0
    %1517 = vmatpush1.msra.mxu0 0.0
    %1518 = vmatprep.mubr.f32.mxu0 0.0
    %v1519 = vand.u32 %v1133, 4294901760
    %1520 = vmatmul.mubr.f32.gmra.mrb[0].mxu0 %v1519
    %v1521 = vpop.f32.mrb[0].mxu0
    %v1522 = vadd.f32 %v1445, %v1521
    %v1523 = vpop.f32.mrb[0].mxu0
    %1524 = vdwg.mxu0
    %1525 = vmatprep.subr.mxu0 0.0
    %v1526 = vand.u32 %v1122, 4294901760
    %1527 = vmatpush1.msra.mxu0 %v1526
    %1528 = vmatprep.subr.mxu0 0.0
    %v1529 = vand.u32 %v1137, 4294901760
    %1530 = vmatpush1.msra.mxu0 %v1529
    %1531 = vmatprep.subr.mxu0 0.0
    %1532 = vmatpush1.msra.mxu0 0.0
    %1533 = vmatprep.subr.mxu0 0.0
    %1534 = vmatpush1.msra.mxu0 0.0
    %1535 = vmatprep.subr.mxu0 0.0
    %1536 = vmatpush1.msra.mxu0 0.0
    %1537 = vmatprep.subr.mxu0 0.0
    %1538 = vmatpush1.msra.mxu0 0.0
    %1539 = vmatprep.subr.mxu0 0.0
    %1540 = vmatpush1.msra.mxu0 0.0
    %1541 = vmatprep.subr.mxu0 0.0
    %1542 = vmatpush1.msra.mxu0 0.0
    %1543 = vmatprep.subr.mxu0 0.0
    %1544 = vmatpush1.msra.mxu0 0.0
    %1545 = vmatprep.subr.mxu0 0.0
    %1546 = vmatpush1.msra.mxu0 0.0
    %1547 = vmatprep.subr.mxu0 0.0
    %1548 = vmatpush1.msra.mxu0 0.0
    %1549 = vmatprep.subr.mxu0 0.0
    %1550 = vmatpush1.msra.mxu0 0.0
    %1551 = vmatprep.subr.mxu0 0.0
    %1552 = vmatpush1.msra.mxu0 0.0
    %1553 = vmatprep.subr.mxu0 0.0
    %1554 = vmatpush1.msra.mxu0 0.0
    %1555 = vmatprep.subr.mxu0 0.0
    %1556 = vmatpush1.msra.mxu0 0.0
    %1557 = vmatprep.subr.mxu0 0.0
    %1558 = vmatpush1.msra.mxu0 0.0
    %1559 = vmatprep.subr.mxu0 0.0
    %1560 = vmatpush1.msra.mxu0 0.0
    %1561 = vmatprep.subr.mxu0 0.0
    %1562 = vmatpush1.msra.mxu0 0.0
    %1563 = vmatprep.subr.mxu0 0.0
    %1564 = vmatpush1.msra.mxu0 0.0
    %1565 = vmatprep.subr.mxu0 0.0
    %1566 = vmatpush1.msra.mxu0 0.0
    %1567 = vmatprep.subr.mxu0 0.0
    %1568 = vmatpush1.msra.mxu0 0.0
    %1569 = vmatprep.subr.mxu0 0.0
    %1570 = vmatpush1.msra.mxu0 0.0
    %1571 = vmatprep.subr.mxu0 0.0
    %1572 = vmatpush1.msra.mxu0 0.0
    %1573 = vmatprep.subr.mxu0 0.0
    %1574 = vmatpush1.msra.mxu0 0.0
    %1575 = vmatprep.subr.mxu0 0.0
    %1576 = vmatpush1.msra.mxu0 0.0
    %1577 = vmatprep.subr.mxu0 0.0
    %1578 = vmatpush1.msra.mxu0 0.0
    %1579 = vmatprep.subr.mxu0 0.0
    %1580 = vmatpush1.msra.mxu0 0.0
    %1581 = vmatprep.subr.mxu0 0.0
    %1582 = vmatpush1.msra.mxu0 0.0
    %1583 = vmatprep.subr.mxu0 0.0
    %1584 = vmatpush1.msra.mxu0 0.0
    %1585 = vmatprep.subr.mxu0 0.0
    %1586 = vmatpush1.msra.mxu0 0.0
    %1587 = vmatprep.subr.mxu0 0.0
    %1588 = vmatpush1.msra.mxu0 0.0
    %1589 = vmatprep.subr.mxu0 0.0
    %1590 = vmatpush1.msra.mxu0 0.0
    %1591 = vmatprep.mubr.f32.mxu0 0.0
    %v1592 = vand.u32 %v1133, 4294901760
    %1593 = vmatmul.mubr.f32.gmra.mrb[0].mxu0 %v1592
    %v1594 = vpop.f32.mrb[0].mxu0
    %v1595 = vadd.f32 %v1522, %v1594
    %v1596 = vpop.f32.mrb[0].mxu0
    %1597 = vdwg.mxu0
    %vm1598 = vcmask 59392
    %1599 = vst.msk [vmem:[#allocation2] sm:$0x7] %vm1598, %v1595
    // Predicated region
    $region10: #{forward.1} parent=1 // pred_check
      _
    $region11: #{forward.1} parent=1 // pred_check_branch
      %1601 = sbr.rel (0) target = $region13
    $region12: #{forward.1} parent=1 // pred_region
      %s1603 = ssub.s32 64, 64
      %1604 = vsyncadd [#allocation3], %s1603
      %s1606 = sshll.u32 [#allocation2], 4
      %s1607 = int_to_ptr.vmem [resolvable:$true] %s1606
      %1609 = dma.vmem_to_hbm [thread:$0]  %s1607, 64, %s2, [#allocation3]
    $region13: #{forward.1} parent=1 // pred_fallthru
      _
    // Predicated region
    $region14: #{forward.1} parent=1 // pred_check
      _
    $region15: #{forward.1} parent=1 // pred_check_branch
      %1611 = sbr.rel (0) target = $region17
    $region16: #{forward.1} parent=1 // pred_region
      %1612 = dma.done [#allocation3], 64
    $region17: #{forward.1} parent=1 // pred_fallthru
      _
    %1613 = vsyncpa [#allocation3], 1

</llo_original>
